<compile_context>
chip_gen: v7x
topology: tpu7x:2x2x1
jax: 0.10.0
libtpu: 0.0.40
codegen_flags: <defaults>
</compile_context>

<pallas_src>
from functools import partial

import jax
import jax.numpy as jnp
import numpy as np
from jax.experimental import pallas as pl
from jax.experimental.pallas import tpu as pltpu


def _round_up(x, m):
    return (x + m - 1) // m * m


# ---------------------------------------------------------------------------
# Pallas kernel: complex contraction over the input-channel axis.
#   refs:  ar/ai : (I, B, TS)   wr/wi : (I, o_blk, TS)   or/oi : (B, o_blk, TS)
#   out[b, o, s] = sum_i (ar + j*ai)[i, b, s] * (wr + j*wi)[i, o, s]
# ---------------------------------------------------------------------------
def _contract_kernel(ar_ref, ai_ref, wr_ref, wi_ref, or_ref, oi_ref,
                     *, unroll, acc_in_regs):
    I, B, TS = ar_ref.shape
    o_blk = wr_ref.shape[1]

    def gauss(i):
        a_r = ar_ref[i][:, None, :]          # (B, 1, TS)
        a_i = ai_ref[i][:, None, :]
        w_r = wr_ref[i][None, :, :]          # (1, o_blk, TS)
        w_i = wi_ref[i][None, :, :]
        # Gauss / Karatsuba 3-multiply complex product
        k1 = w_r * (a_r + a_i)
        k2 = a_r * (w_i - w_r)
        k3 = a_i * (w_r + w_i)
        return k1 - k3, k1 + k2              # (real, imag), each (B, o_blk, TS)

    if acc_in_regs:
        # Accumulators live entirely in vregs: block sizes were chosen so that
        # 2 * B * o_blk * TS * 4 bytes fits the vreg budget (no spills).
        def body(i, carry):
            acc_r, acc_i = carry
            p_r, p_i = gauss(i)
            return acc_r + p_r, acc_i + p_i

        zeros = jnp.zeros((B, o_blk, TS), jnp.float32)
        acc_r, acc_i = jax.lax.fori_loop(0, I, body, (zeros, zeros),
                                         unroll=unroll)
        or_ref[...] = acc_r
        oi_ref[...] = acc_i
    else:
        # Large-B fallback: accumulate into the VMEM-resident output block
        # (bounded live set; trades a per-iteration VMEM load/store for vreg safety).
        or_ref[...] = jnp.zeros_like(or_ref)
        oi_ref[...] = jnp.zeros_like(oi_ref)

        def body(i, carry):
            p_r, p_i = gauss(i)
            or_ref[...] += p_r
            oi_ref[...] += p_i
            return carry

        jax.lax.fori_loop(0, I, body, 0, unroll=1)


# ---------------------------------------------------------------------------
# Tiling heuristics (generation-aware)
# ---------------------------------------------------------------------------
_ACC_VREG_BUDGET = 64 * 1024      # bytes allowed for the two loop-carried f32 accumulators


def _choose_o_block(O_pad, B):
    """Largest output-channel block (multiple of 8, divides O_pad) whose minimal
    (tile=128) accumulator pair still fits the vreg budget."""
    max_by_regs = _ACC_VREG_BUDGET // (2 * 4 * max(B, 1) * 128)
    for cand in (64, 32, 16, 8):
        if cand <= O_pad and cand <= max_by_regs and O_pad % cand == 0:
            return cand
    return 8


def _choose_tiling(S, B, I, O_pad, o_blk):
    """Lane-tile choice aware of VMEM capacity (v5e/v6e: 128 MiB, v7x: 64 MiB)."""
    try:
        info = pltpu.get_tpu_info()
        vmem_cap = int(getattr(info, "vmem_capacity_bytes", 64 * 1024 * 1024))
    except Exception:
        vmem_cap = 64 * 1024 * 1024                     # conservative (v7x-safe)
    vmem_budget = min(int(vmem_cap * 0.4), 64 * 1024 * 1024)
    vmem_limit = min(vmem_cap // 2, 96 * 1024 * 1024)

    # double-buffered re+im f32 bytes per lane of the tile (a, w and out blocks)
    per_lane = 4 * 2 * 2 * (I * B + I * o_blk + B * o_blk)
    acc_in_regs = 2 * B * o_blk * 128 * 4 <= _ACC_VREG_BUDGET

    s_cap = _round_up(max(S, 128), 128)
    tile = 128
    for cand in (2048, 1024, 512, 256, 128):
        if cand > s_cap:
            continue
        if cand * per_lane > vmem_budget:
            continue
        if acc_in_regs and 2 * B * o_blk * cand * 4 > _ACC_VREG_BUDGET:
            continue
        tile = cand
        break

    n_o = pl.cdiv(O_pad, o_blk)
    # keep enough grid steps so the software pipeline can overlap DMA with compute
    while tile > 128 and pl.cdiv(S, tile) * n_o < 4:
        tile //= 2
    # mild preference for an even grid-step count (balances v7x's two TensorCores)
    if tile > 128 and (pl.cdiv(S, tile) * n_o) % 2 == 1:
        tile //= 2
    return tile, acc_in_regs, vmem_limit


def contract_corners(ar, ai, wr, wi):
    """ar/ai: (I, B, S) f32 activations (corners folded into S)
       wr/wi: (I, O_pad, S) f32 pre-packed weights (O_pad a multiple of 8)
       returns (out_r, out_i): (B, O_pad, S) f32
    """
    I, B, S = ar.shape
    O_pad = wr.shape[1]

    o_blk = _choose_o_block(O_pad, B)
    tile, acc_in_regs, vmem_limit = _choose_tiling(S, B, I, O_pad, o_blk)
    n_s = pl.cdiv(S, tile)
    n_o = pl.cdiv(O_pad, o_blk)

    # unroll tied to the vreg footprint of the per-iteration temps (k1/k2/k3)
    per_iter_tmp = 3 * B * o_blk * tile * 4
    if not acc_in_regs:
        unroll = 1
    elif per_iter_tmp <= 16 * 1024:
        unroll = min(I, 8)
    elif per_iter_tmp <= 48 * 1024:
        unroll = min(I, 4)
    elif per_iter_tmp <= 96 * 1024:
        unroll = min(I, 2)
    else:
        unroll = 1
    unroll = max(1, int(unroll))

    kernel = partial(_contract_kernel, unroll=unroll, acc_in_regs=acc_in_regs)

    # o innermost in the grid -> the activation block (keyed by s only) is fetched
    # once per s tile and reused across all o steps.
    a_spec = pl.BlockSpec((I, B, tile), lambda s, o: (0, 0, s))
    w_spec = pl.BlockSpec((I, o_blk, tile), lambda s, o: (0, o, s))
    o_spec = pl.BlockSpec((B, o_blk, tile), lambda s, o: (0, o, s))

    out_r, out_i = pl.pallas_call(
        kernel,
        grid=(n_s, n_o),
        in_specs=[a_spec, a_spec, w_spec, w_spec],
        out_specs=[o_spec, o_spec],
        out_shape=[jax.ShapeDtypeStruct((B, O_pad, S), jnp.float32),
                   jax.ShapeDtypeStruct((B, O_pad, S), jnp.float32)],
        compiler_params=pltpu.CompilerParams(
            dimension_semantics=("parallel", "parallel"),
            vmem_limit_bytes=vmem_limit),
    )(ar, ai, wr, wi)
    return out_r, out_i


# ---------------------------------------------------------------------------
# One-time weight preparation (hoisted out of the per-call forward)
# ---------------------------------------------------------------------------
def pack_spectral_weights(weight, *, modes_h, modes_w, modes_d, indices=0):
    """weight: (4*n_layers, I, O, mh, mw, md) complex64 dense weight tensor.
    Returns (wr, wi): (I, O_pad, 3*mh*mw*md) float32 with O zero-padded to a
    multiple of 8 sublanes and the 3 active corners (0, 1, 3) folded into the
    last axis.  Corner 2 is dropped: under the reference's own H == 2*mh shape
    constraint its output region is fully overwritten by corner 3.
    """
    mh, mw, md = modes_h, modes_w, modes_d
    S1 = mh * mw * md
    I, O = weight.shape[1], weight.shape[2]
    O_pad = _round_up(O, 8)
    w_c = jnp.concatenate(
        [weight[4 * indices + c].reshape(I, O, S1) for c in (0, 1, 3)], axis=-1)
    wr = jnp.real(w_c).astype(jnp.float32)
    wi = jnp.imag(w_c).astype(jnp.float32)
    if O_pad != O:
        cfg = ((0, 0), (0, O_pad - O), (0, 0))
        wr, wi = jnp.pad(wr, cfg), jnp.pad(wi, cfg)
    return wr, wi


# ---------------------------------------------------------------------------
# Full forward pass (FFT glue in plain JAX, contraction in Pallas)
# ---------------------------------------------------------------------------
@partial(jax.jit, static_argnames=("modes_h", "modes_w", "modes_d",
                                   "out_channels", "fft_norm"))
def factorized_spectral_conv3d(x, wr_packed, wi_packed, bias, *,
                               modes_h, modes_w, modes_d, out_channels,
                               fft_norm="backward"):
    B, C_in, H, W, D = x.shape
    in_dtype = x.dtype
    mh, mw, md = modes_h, modes_w, modes_d
    O = out_channels

    # TODO(synk): no Pallas FFT primitive — rfftn/irfftn stay in plain JAX.
    x_ft = jnp.fft.rfftn(x.astype(jnp.float32), axes=(-3, -2, -1), norm=fft_norm)

    # Reference corner-2 slicing (`modes_height:`) only type-checks when H == 2*mh,
    # in which case corner 2's output region is fully overwritten by corner 3,
    # so corner 2 is skipped (numerically identical, 25% less work).
    assert H == 2 * mh, "reference corner-2 slicing requires height == 2 * modes_height"

    S1 = mh * mw * md
    parts = [x_ft[:, :, :mh, :mw, :md],      # corner 0
             x_ft[:, :, -mh:, :mw, :md],     # corner 1
             x_ft[:, :, -mh:, -mw:, :md]]    # corner 3
    a_c = jnp.concatenate(
        [jnp.transpose(p, (1, 0, 2, 3, 4)).reshape(C_in, B, S1) for p in parts],
        axis=-1)                                                   # (I, B, 3*S1)
    ar = jnp.real(a_c)
    ai = jnp.imag(a_c)

    out_r, out_i = contract_corners(ar, ai, wr_packed, wi_packed)  # (B, O_pad, 3*S1)
    res = jax.lax.complex(out_r[:, :O, :], out_i[:, :O, :])        # (B, O, 3*S1)

    r0 = res[..., 0 * S1:1 * S1].reshape(B, O, mh, mw, md)
    r1 = res[..., 1 * S1:2 * S1].reshape(B, O, mh, mw, md)
    r3 = res[..., 2 * S1:3 * S1].reshape(B, O, mh, mw, md)

    out_fft = jnp.zeros((B, O, H, W, D // 2 + 1), jnp.complex64)
    out_fft = out_fft.at[:, :, :mh, :mw, :md].set(r0)
    out_fft = out_fft.at[:, :, -mh:, :mw, :md].set(r1)
    out_fft = out_fft.at[:, :, -mh:, -mw:, :md].set(r3)

    y = jnp.fft.irfftn(out_fft, s=(H, W, D), axes=(-3, -2, -1),
                       norm=fft_norm).astype(in_dtype)
    return y + bias   # bias (O,1,1,1) broadcasts over (B, O, H, W, D)


# ---------------------------------------------------------------------------
# Pure-JAX reference (direct einsum, all 4 corners as in the PyTorch module)
# ---------------------------------------------------------------------------
def reference_forward(x, weight, bias, mh, mw, md, indices=0, fft_norm="backward"):
    B, C, H, W, D = x.shape
    x_ft = jnp.fft.rfftn(x.astype(jnp.float32), axes=(-3, -2, -1), norm=fft_norm)
    O = weight.shape[2]
    contract = lambda a, w: jnp.einsum('bixyz,ioxyz->boxyz', a, w)
    out_fft = jnp.zeros((B, O, H, W, D // 2 + 1), jnp.complex64)
    out_fft = out_fft.at[:, :, :mh, :mw, :md].set(
        contract(x_ft[:, :, :mh, :mw, :md], weight[4 * indices + 0]))
    out_fft = out_fft.at[:, :, -mh:, :mw, :md].set(
        contract(x_ft[:, :, -mh:, :mw, :md], weight[4 * indices + 1]))
    out_fft = out_fft.at[:, :, mh:, -mw:, :md].set(
        contract(x_ft[:, :, mh:, -mw:, :md], weight[4 * indices + 2]))
    out_fft = out_fft.at[:, :, -mh:, -mw:, :md].set(
        contract(x_ft[:, :, -mh:, -mw:, :md], weight[4 * indices + 3]))
    y = jnp.fft.irfftn(out_fft, s=(H, W, D), axes=(-3, -2, -1), norm=fft_norm).astype(x.dtype)
    return y + bias


if __name__ == "__main__":
    # small shapes consistent with the module
    B, C_in, C_out = 2, 4, 6
    H, W, D = 8, 8, 8
    mh, mw, md = 4, 4, 3          # H == 2*mh (required by the reference's corner-2 slice)
    n_layers = 1

    key = jax.random.PRNGKey(0)
    kx, kwr, kwi, kb = jax.random.split(key, 4)

    scale = 1.0 / (C_in * C_out)
    # dense-weight parametrization (factorization=None path); tltorch CP not reproduced,
    # semantics are identical since forward only consumes the reconstructed dense tensor.
    w_real = jax.random.normal(kwr, (4 * n_layers, C_in, C_out, mh, mw, md), jnp.float32)
    w_imag = jax.random.normal(kwi, (4 * n_layers, C_in, C_out, mh, mw, md), jnp.float32)
    weight = (scale * (w_real + 1j * w_imag)).astype(jnp.complex64)
    bias = scale * jax.random.normal(kb, (C_out, 1, 1, 1), jnp.float32)

    x = jax.random.normal(kx, (B, C_in, H, W, D), jnp.float32)

    # one-time weight packing (hoisted out of the per-call forward, per perf review)
    wr_p, wi_p = pack_spectral_weights(weight, modes_h=mh, modes_w=mw, modes_d=md,
                                       indices=0)
    wr_p, wi_p = jax.block_until_ready((wr_p, wi_p))

    y = factorized_spectral_conv3d(x, wr_p, wi_p, bias,
                                   modes_h=mh, modes_w=mw, modes_d=md,
                                   out_channels=C_out, fft_norm="backward")
    y = jax.block_until_ready(y)

    y_ref = jax.block_until_ready(
        reference_forward(x, weight, bias, mh, mw, md, indices=0))
    assert y.shape == (B, C_out, H, W, D)
    assert np.allclose(np.asarray(y), np.asarray(y_ref), atol=1e-4, rtol=1e-4)

    print("KERNEL_OK")
</pallas_src>

<mosaic_0001>
module attributes {stable_mosaic.version = 11 : i64} {
  func.func @_contract_kernel(%arg0: i32, %arg1: i32, %arg2: memref<4x2x128xf32, #tpu.memory_space<vmem>>, %arg3: memref<4x2x128xf32, #tpu.memory_space<vmem>>, %arg4: memref<4x8x128xf32, #tpu.memory_space<vmem>>, %arg5: memref<4x8x128xf32, #tpu.memory_space<vmem>>, %arg6: memref<2x8x128xf32, #tpu.memory_space<vmem>>, %arg7: memref<2x8x128xf32, #tpu.memory_space<vmem>>) attributes {dimension_semantics = [#tpu.dimension_semantics<parallel>, #tpu.dimension_semantics<parallel>], iteration_bounds = array<i64: 2, 1>, scalar_prefetch = 0 : i64, scratch_operands = 0 : i64, tpu.core_type = #tpu.core_type<tc>, window_params = [{transform_indices = @transform_0, window_bounds = array<i64: 4, 2, 128>}, {transform_indices = @transform_1, window_bounds = array<i64: 4, 2, 128>}, {transform_indices = @transform_2, window_bounds = array<i64: 4, 8, 128>}, {transform_indices = @transform_3, window_bounds = array<i64: 4, 8, 128>}, {transform_indices = @transform_4, window_bounds = array<i64: 2, 8, 128>}, {transform_indices = @transform_5, window_bounds = array<i64: 2, 8, 128>}]} {
    %cst = arith.constant 0.000000e+00 : f32
    %0 = vector.broadcast %cst : f32 to vector<2x8x128xf32>
    %c0_i32 = arith.constant 0 : i32
    %1 = arith.index_cast %c0_i32 : i32 to index
    %c0 = arith.constant 0 : index
    %c0_0 = arith.constant 0 : index
    %2 = vector.load %arg2[%1, %c0, %c0_0] : memref<4x2x128xf32, #tpu.memory_space<vmem>>, vector<1x2x128xf32>
    %3 = vector.shape_cast %2 : vector<1x2x128xf32> to vector<2x128xf32>
    %4 = vector.shape_cast %3 : vector<2x128xf32> to vector<2x1x128xf32>
    %5 = arith.index_cast %c0_i32 : i32 to index
    %c0_1 = arith.constant 0 : index
    %c0_2 = arith.constant 0 : index
    %6 = vector.load %arg3[%5, %c0_1, %c0_2] : memref<4x2x128xf32, #tpu.memory_space<vmem>>, vector<1x2x128xf32>
    %7 = vector.shape_cast %6 : vector<1x2x128xf32> to vector<2x128xf32>
    %8 = vector.shape_cast %7 : vector<2x128xf32> to vector<2x1x128xf32>
    %9 = arith.index_cast %c0_i32 : i32 to index
    %c0_3 = arith.constant 0 : index
    %c0_4 = arith.constant 0 : index
    %10 = vector.load %arg4[%9, %c0_3, %c0_4] : memref<4x8x128xf32, #tpu.memory_space<vmem>>, vector<1x8x128xf32>
    %11 = vector.shape_cast %10 : vector<1x8x128xf32> to vector<8x128xf32>
    %12 = vector.shape_cast %11 : vector<8x128xf32> to vector<1x8x128xf32>
    %13 = arith.index_cast %c0_i32 : i32 to index
    %c0_5 = arith.constant 0 : index
    %c0_6 = arith.constant 0 : index
    %14 = vector.load %arg5[%13, %c0_5, %c0_6] : memref<4x8x128xf32, #tpu.memory_space<vmem>>, vector<1x8x128xf32>
    %15 = vector.shape_cast %14 : vector<1x8x128xf32> to vector<8x128xf32>
    %16 = vector.shape_cast %15 : vector<8x128xf32> to vector<1x8x128xf32>
    %17 = arith.addf %4, %8 : vector<2x1x128xf32>
    %18 = vector.broadcast %12 : vector<1x8x128xf32> to vector<2x8x128xf32>
    %19 = vector.broadcast %17 : vector<2x1x128xf32> to vector<2x8x128xf32>
    %20 = arith.mulf %18, %19 : vector<2x8x128xf32>
    %21 = arith.subf %16, %12 : vector<1x8x128xf32>
    %22 = vector.broadcast %4 : vector<2x1x128xf32> to vector<2x8x128xf32>
    %23 = vector.broadcast %21 : vector<1x8x128xf32> to vector<2x8x128xf32>
    %24 = arith.mulf %22, %23 : vector<2x8x128xf32>
    %25 = arith.addf %12, %16 : vector<1x8x128xf32>
    %26 = vector.broadcast %8 : vector<2x1x128xf32> to vector<2x8x128xf32>
    %27 = vector.broadcast %25 : vector<1x8x128xf32> to vector<2x8x128xf32>
    %28 = arith.mulf %26, %27 : vector<2x8x128xf32>
    %29 = arith.subf %20, %28 : vector<2x8x128xf32>
    %30 = arith.addf %20, %24 : vector<2x8x128xf32>
    %31 = arith.addf %0, %29 : vector<2x8x128xf32>
    %32 = arith.addf %0, %30 : vector<2x8x128xf32>
    %c1_i32 = arith.constant 1 : i32
    %33 = arith.index_cast %c1_i32 : i32 to index
    %c0_7 = arith.constant 0 : index
    %c0_8 = arith.constant 0 : index
    %34 = vector.load %arg2[%33, %c0_7, %c0_8] : memref<4x2x128xf32, #tpu.memory_space<vmem>>, vector<1x2x128xf32>
    %35 = vector.shape_cast %34 : vector<1x2x128xf32> to vector<2x128xf32>
    %36 = vector.shape_cast %35 : vector<2x128xf32> to vector<2x1x128xf32>
    %37 = arith.index_cast %c1_i32 : i32 to index
    %c0_9 = arith.constant 0 : index
    %c0_10 = arith.constant 0 : index
    %38 = vector.load %arg3[%37, %c0_9, %c0_10] : memref<4x2x128xf32, #tpu.memory_space<vmem>>, vector<1x2x128xf32>
    %39 = vector.shape_cast %38 : vector<1x2x128xf32> to vector<2x128xf32>
    %40 = vector.shape_cast %39 : vector<2x128xf32> to vector<2x1x128xf32>
    %41 = arith.index_cast %c1_i32 : i32 to index
    %c0_11 = arith.constant 0 : index
    %c0_12 = arith.constant 0 : index
    %42 = vector.load %arg4[%41, %c0_11, %c0_12] : memref<4x8x128xf32, #tpu.memory_space<vmem>>, vector<1x8x128xf32>
    %43 = vector.shape_cast %42 : vector<1x8x128xf32> to vector<8x128xf32>
    %44 = vector.shape_cast %43 : vector<8x128xf32> to vector<1x8x128xf32>
    %45 = arith.index_cast %c1_i32 : i32 to index
    %c0_13 = arith.constant 0 : index
    %c0_14 = arith.constant 0 : index
    %46 = vector.load %arg5[%45, %c0_13, %c0_14] : memref<4x8x128xf32, #tpu.memory_space<vmem>>, vector<1x8x128xf32>
    %47 = vector.shape_cast %46 : vector<1x8x128xf32> to vector<8x128xf32>
    %48 = vector.shape_cast %47 : vector<8x128xf32> to vector<1x8x128xf32>
    %49 = arith.addf %36, %40 : vector<2x1x128xf32>
    %50 = vector.broadcast %44 : vector<1x8x128xf32> to vector<2x8x128xf32>
    %51 = vector.broadcast %49 : vector<2x1x128xf32> to vector<2x8x128xf32>
    %52 = arith.mulf %50, %51 : vector<2x8x128xf32>
    %53 = arith.subf %48, %44 : vector<1x8x128xf32>
    %54 = vector.broadcast %36 : vector<2x1x128xf32> to vector<2x8x128xf32>
    %55 = vector.broadcast %53 : vector<1x8x128xf32> to vector<2x8x128xf32>
    %56 = arith.mulf %54, %55 : vector<2x8x128xf32>
    %57 = arith.addf %44, %48 : vector<1x8x128xf32>
    %58 = vector.broadcast %40 : vector<2x1x128xf32> to vector<2x8x128xf32>
    %59 = vector.broadcast %57 : vector<1x8x128xf32> to vector<2x8x128xf32>
    %60 = arith.mulf %58, %59 : vector<2x8x128xf32>
    %61 = arith.subf %52, %60 : vector<2x8x128xf32>
    %62 = arith.addf %52, %56 : vector<2x8x128xf32>
    %63 = arith.addf %31, %61 : vector<2x8x128xf32>
    %64 = arith.addf %32, %62 : vector<2x8x128xf32>
    %c2_i32 = arith.constant 2 : i32
    %65 = arith.index_cast %c2_i32 : i32 to index
    %c0_15 = arith.constant 0 : index
    %c0_16 = arith.constant 0 : index
    %66 = vector.load %arg2[%65, %c0_15, %c0_16] : memref<4x2x128xf32, #tpu.memory_space<vmem>>, vector<1x2x128xf32>
    %67 = vector.shape_cast %66 : vector<1x2x128xf32> to vector<2x128xf32>
    %68 = vector.shape_cast %67 : vector<2x128xf32> to vector<2x1x128xf32>
    %69 = arith.index_cast %c2_i32 : i32 to index
    %c0_17 = arith.constant 0 : index
    %c0_18 = arith.constant 0 : index
    %70 = vector.load %arg3[%69, %c0_17, %c0_18] : memref<4x2x128xf32, #tpu.memory_space<vmem>>, vector<1x2x128xf32>
    %71 = vector.shape_cast %70 : vector<1x2x128xf32> to vector<2x128xf32>
    %72 = vector.shape_cast %71 : vector<2x128xf32> to vector<2x1x128xf32>
    %73 = arith.index_cast %c2_i32 : i32 to index
    %c0_19 = arith.constant 0 : index
    %c0_20 = arith.constant 0 : index
    %74 = vector.load %arg4[%73, %c0_19, %c0_20] : memref<4x8x128xf32, #tpu.memory_space<vmem>>, vector<1x8x128xf32>
    %75 = vector.shape_cast %74 : vector<1x8x128xf32> to vector<8x128xf32>
    %76 = vector.shape_cast %75 : vector<8x128xf32> to vector<1x8x128xf32>
    %77 = arith.index_cast %c2_i32 : i32 to index
    %c0_21 = arith.constant 0 : index
    %c0_22 = arith.constant 0 : index
    %78 = vector.load %arg5[%77, %c0_21, %c0_22] : memref<4x8x128xf32, #tpu.memory_space<vmem>>, vector<1x8x128xf32>
    %79 = vector.shape_cast %78 : vector<1x8x128xf32> to vector<8x128xf32>
    %80 = vector.shape_cast %79 : vector<8x128xf32> to vector<1x8x128xf32>
    %81 = arith.addf %68, %72 : vector<2x1x128xf32>
    %82 = vector.broadcast %76 : vector<1x8x128xf32> to vector<2x8x128xf32>
    %83 = vector.broadcast %81 : vector<2x1x128xf32> to vector<2x8x128xf32>
    %84 = arith.mulf %82, %83 : vector<2x8x128xf32>
    %85 = arith.subf %80, %76 : vector<1x8x128xf32>
    %86 = vector.broadcast %68 : vector<2x1x128xf32> to vector<2x8x128xf32>
    %87 = vector.broadcast %85 : vector<1x8x128xf32> to vector<2x8x128xf32>
    %88 = arith.mulf %86, %87 : vector<2x8x128xf32>
    %89 = arith.addf %76, %80 : vector<1x8x128xf32>
    %90 = vector.broadcast %72 : vector<2x1x128xf32> to vector<2x8x128xf32>
    %91 = vector.broadcast %89 : vector<1x8x128xf32> to vector<2x8x128xf32>
    %92 = arith.mulf %90, %91 : vector<2x8x128xf32>
    %93 = arith.subf %84, %92 : vector<2x8x128xf32>
    %94 = arith.addf %84, %88 : vector<2x8x128xf32>
    %95 = arith.addf %63, %93 : vector<2x8x128xf32>
    %96 = arith.addf %64, %94 : vector<2x8x128xf32>
    %c3_i32 = arith.constant 3 : i32
    %97 = arith.index_cast %c3_i32 : i32 to index
    %c0_23 = arith.constant 0 : index
    %c0_24 = arith.constant 0 : index
    %98 = vector.load %arg2[%97, %c0_23, %c0_24] : memref<4x2x128xf32, #tpu.memory_space<vmem>>, vector<1x2x128xf32>
    %99 = vector.shape_cast %98 : vector<1x2x128xf32> to vector<2x128xf32>
    %100 = vector.shape_cast %99 : vector<2x128xf32> to vector<2x1x128xf32>
    %101 = arith.index_cast %c3_i32 : i32 to index
    %c0_25 = arith.constant 0 : index
    %c0_26 = arith.constant 0 : index
    %102 = vector.load %arg3[%101, %c0_25, %c0_26] : memref<4x2x128xf32, #tpu.memory_space<vmem>>, vector<1x2x128xf32>
    %103 = vector.shape_cast %102 : vector<1x2x128xf32> to vector<2x128xf32>
    %104 = vector.shape_cast %103 : vector<2x128xf32> to vector<2x1x128xf32>
    %105 = arith.index_cast %c3_i32 : i32 to index
    %c0_27 = arith.constant 0 : index
    %c0_28 = arith.constant 0 : index
    %106 = vector.load %arg4[%105, %c0_27, %c0_28] : memref<4x8x128xf32, #tpu.memory_space<vmem>>, vector<1x8x128xf32>
    %107 = vector.shape_cast %106 : vector<1x8x128xf32> to vector<8x128xf32>
    %108 = vector.shape_cast %107 : vector<8x128xf32> to vector<1x8x128xf32>
    %109 = arith.index_cast %c3_i32 : i32 to index
    %c0_29 = arith.constant 0 : index
    %c0_30 = arith.constant 0 : index
    %110 = vector.load %arg5[%109, %c0_29, %c0_30] : memref<4x8x128xf32, #tpu.memory_space<vmem>>, vector<1x8x128xf32>
    %111 = vector.shape_cast %110 : vector<1x8x128xf32> to vector<8x128xf32>
    %112 = vector.shape_cast %111 : vector<8x128xf32> to vector<1x8x128xf32>
    %113 = arith.addf %100, %104 : vector<2x1x128xf32>
    %114 = vector.broadcast %108 : vector<1x8x128xf32> to vector<2x8x128xf32>
    %115 = vector.broadcast %113 : vector<2x1x128xf32> to vector<2x8x128xf32>
    %116 = arith.mulf %114, %115 : vector<2x8x128xf32>
    %117 = arith.subf %112, %108 : vector<1x8x128xf32>
    %118 = vector.broadcast %100 : vector<2x1x128xf32> to vector<2x8x128xf32>
    %119 = vector.broadcast %117 : vector<1x8x128xf32> to vector<2x8x128xf32>
    %120 = arith.mulf %118, %119 : vector<2x8x128xf32>
    %121 = arith.addf %108, %112 : vector<1x8x128xf32>
    %122 = vector.broadcast %104 : vector<2x1x128xf32> to vector<2x8x128xf32>
    %123 = vector.broadcast %121 : vector<1x8x128xf32> to vector<2x8x128xf32>
    %124 = arith.mulf %122, %123 : vector<2x8x128xf32>
    %125 = arith.subf %116, %124 : vector<2x8x128xf32>
    %126 = arith.addf %116, %120 : vector<2x8x128xf32>
    %127 = arith.addf %95, %125 : vector<2x8x128xf32>
    %128 = arith.addf %96, %126 : vector<2x8x128xf32>
    %c4_i32 = arith.constant 4 : i32
    %c0_31 = arith.constant 0 : index
    %c0_32 = arith.constant 0 : index
    %c0_33 = arith.constant 0 : index
    %129 = vector.load %arg6[%c0_31, %c0_32, %c0_33] : memref<2x8x128xf32, #tpu.memory_space<vmem>>, vector<2x8x128xf32>
    tpu.vector_store %arg6[%c0_31, %c0_32, %c0_33], %127 {strides = array<i32>} : memref<2x8x128xf32, #tpu.memory_space<vmem>>, vector<2x8x128xf32>,
    %c0_34 = arith.constant 0 : index
    %c0_35 = arith.constant 0 : index
    %c0_36 = arith.constant 0 : index
    %130 = vector.load %arg7[%c0_34, %c0_35, %c0_36] : memref<2x8x128xf32, #tpu.memory_space<vmem>>, vector<2x8x128xf32>
    tpu.vector_store %arg7[%c0_34, %c0_35, %c0_36], %128 {strides = array<i32>} : memref<2x8x128xf32, #tpu.memory_space<vmem>>, vector<2x8x128xf32>,
    return
  }
  func.func @transform_0(%arg0: i32, %arg1: i32) -> (i32, i32, i32) {
    %c0_i32 = arith.constant 0 : i32
    %c0_i32_0 = arith.constant 0 : i32
    %c0_i32_1 = arith.constant 0 : i32
    return %c0_i32, %c0_i32_0, %arg0 : i32, i32, i32
  }
  func.func @transform_1(%arg0: i32, %arg1: i32) -> (i32, i32, i32) {
    %c0_i32 = arith.constant 0 : i32
    %c0_i32_0 = arith.constant 0 : i32
    %c0_i32_1 = arith.constant 0 : i32
    return %c0_i32, %c0_i32_0, %arg0 : i32, i32, i32
  }
  func.func @transform_2(%arg0: i32, %arg1: i32) -> (i32, i32, i32) {
    %c0_i32 = arith.constant 0 : i32
    %c0_i32_0 = arith.constant 0 : i32
    return %c0_i32, %arg1, %arg0 : i32, i32, i32
  }
  func.func @transform_3(%arg0: i32, %arg1: i32) -> (i32, i32, i32) {
    %c0_i32 = arith.constant 0 : i32
    %c0_i32_0 = arith.constant 0 : i32
    return %c0_i32, %arg1, %arg0 : i32, i32, i32
  }
  func.func @transform_4(%arg0: i32, %arg1: i32) -> (i32, i32, i32) {
    %c0_i32 = arith.constant 0 : i32
    %c0_i32_0 = arith.constant 0 : i32
    return %c0_i32, %arg1, %arg0 : i32, i32, i32
  }
  func.func @transform_5(%arg0: i32, %arg1: i32) -> (i32, i32, i32) {
    %c0_i32 = arith.constant 0 : i32
    %c0_i32_0 = arith.constant 0 : i32
    return %c0_i32, %arg1, %arg0 : i32, i32, i32
  }
}

</mosaic_0001>

<llo_original>
// kernel: factorized_spectral_conv3d.1
$region0: #{factorized_spectral_conv3d.1}
  #allocation0 [shape = 'u32[]', space=smem, size = 0x4, offset = 0x4, fixed_abs, tag = 'smem constant byte address 0x4 - core index']
  #allocation1 [shape = 'u32[144,128]{1,0:T(1,128)}', space=vmem, size = 0x12000, scoped, tag = 'internal scratch']
  %s0 = inlined_call_operand.vmem [shape: f32[4,2,144], index: 0, kind: input, shape index: {}]
  %s1 = inlined_call_operand.vmem [shape: f32[4,2,144], index: 1, kind: input, shape index: {}]
  %s2 = inlined_call_operand.vmem [shape: f32[4,8,144], index: 2, kind: input, shape index: {}]
  %s3 = inlined_call_operand.vmem [shape: f32[4,8,144], index: 3, kind: input, shape index: {}]
  %s4 = inlined_call_operand.vmem [shape: f32[2,8,144], index: 4, kind: output, shape index: {0}]
  %s5 = inlined_call_operand.vmem [shape: f32[2,8,144], index: 5, kind: output, shape index: {1}]
  %6 = xla_tuple %s4, %s5
  %s7 = sld [smem:[#allocation0]]
  $region283: #{factorized_spectral_conv3d.1} parent=0
    _
  %s9 = ssub.s32 1, %s7
  %s10 = scalar_select 0, %s9, %s7
  $region1: #{factorized_spectral_conv3d.1} parent=0
    #allocation2 [shape = 'u8[8192]{0}', space=vmem, size = 0x2000, scoped, tag = 'input window, operand 0']
    #allocation3 [shape = 'u8[8192]{0}', space=vmem, size = 0x2000, scoped, tag = 'input window, operand 1']
    #allocation4 [shape = 'u8[32768]{0}', space=vmem, size = 0x8000, scoped, tag = 'input window, operand 2']
    #allocation5 [shape = 'u8[32768]{0}', space=vmem, size = 0x8000, scoped, tag = 'input window, operand 3']
    #allocation6 [shape = 'u8[16384]{0}', space=vmem, size = 0x4000, scoped, tag = 'output window, operand 0']
    #allocation7 [shape = 'u8[16384]{0}', space=vmem, size = 0x4000, scoped, tag = 'output window, operand 1']
    loop: start=0, step=1, limit=4
    $region2: #{factorized_spectral_conv3d.1} parent=1 // loop_pre_header
      _
    $region3: #{factorized_spectral_conv3d.1} parent=1 // loop_header
      %s12 = sphi 0, %s16
      %p13 = scmp.ge.s32.totalorder %s12, 4
      %s19 = sphi 0, %s31
      %s20 = sphi 0, %s27
      %s21 = sphi 0, %s19
      %s22 = sphi 0, %s20
      %s23 = sphi 0, %s21
      %s24 = sphi 0, %s22
      %s34 = sphi 0, %s36
      %s37 = sphi 0, %s34
      %s38 = sphi 0, %s37
      %s54 = sphi 0, %s38
      %s60 = sphi 0, %s62
      %s63 = sphi 0, %s60
      %s64 = sphi 0, %s63
      %s80 = sphi 0, %s64
      %s88 = sphi 0, %s90
      %s91 = sphi 0, %s88
      %s92 = sphi 0, %s91
      %s108 = sphi 0, %s92
      %s116 = sphi 0, %s118
      %s119 = sphi 0, %s116
      %s120 = sphi 0, %s119
      %s136 = sphi 0, %s120
      %s144 = sphi 0, %s146
      %s147 = sphi 0, %s144
      %s148 = sphi 0, %s147
      %s164 = sphi 0, %s148
      %s172 = sphi 0, %s174
      %s175 = sphi 0, %s172
      %s176 = sphi 0, %s175
      %s192 = sphi 0, %s176
    $region4: #{factorized_spectral_conv3d.1} parent=1 // loop_header_branch
      %15 = sbr.rel (%p13) target = $region8
    $region5: #{factorized_spectral_conv3d.1} parent=1 // loop_body
      %s17 = ssub.s32 %s12, 1
      %s18 = ssub.s32 %s12, 2
      %s25 = sadd.s32 1, %s20
      %p26 = scmp.ge.s32.totalorder %s25, 1
      %s27 = scalar_select %p26, 0, %s25
      %s28 = sadd.s32 1, %s19
      %s29 = scalar_select %p26, %s28, %s19
      %p30 = scmp.ge.s32.totalorder %s29, 2
      %s31 = scalar_select %p30, 0, %s29
      %s32 = ssub.s32 %s19, %s31
      %p33 = scmp.eq.s32.totalorder %s32, 0
      %s35 = sadd.s32 %s34, 1
      %s36 = scalar_select %p33, %s34, %s35
      %p39 = pneg %p33
      %p40 = scmp.eq.s32.totalorder %s12, 1
      %p41 = por %p39, %p40
      %p42 = scmp.ne.s32.totalorder %s34, %s37
      %p43 = scmp.eq.s32.totalorder %s12, 0
      %p44 = por %p42, %p43
      %p45 = scmp.ne.s32.totalorder %s34, %s37
      %p46 = scmp.eq.s32.totalorder %s17, 1
      %p47 = por %p45, %p46
      %p48 = scmp.ne.s32.totalorder %s37, %s38
      %p49 = scmp.eq.s32.totalorder %s17, 0
      %p50 = por %p48, %p49
      %p51 = scmp.ne.s32.totalorder %s37, %s38
      %p52 = scmp.eq.s32.totalorder %s18, 1
      %p53 = por %p51, %p52
      %p55 = scmp.ne.s32.totalorder %s38, %s54
      %p56 = scmp.eq.s32.totalorder %s18, 0
      %p57 = por %p55, %p56
      %s58 = ssub.s32 %s19, %s31
      %p59 = scmp.eq.s32.totalorder %s58, 0
      %s61 = sadd.s32 %s60, 1
      %s62 = scalar_select %p59, %s60, %s61
      %p65 = pneg %p59
      %p66 = scmp.eq.s32.totalorder %s12, 1
      %p67 = por %p65, %p66
      %p68 = scmp.ne.s32.totalorder %s60, %s63
      %p69 = scmp.eq.s32.totalorder %s12, 0
      %p70 = por %p68, %p69
      %p71 = scmp.ne.s32.totalorder %s60, %s63
      %p72 = scmp.eq.s32.totalorder %s17, 1
      %p73 = por %p71, %p72
      %p74 = scmp.ne.s32.totalorder %s63, %s64
      %p75 = scmp.eq.s32.totalorder %s17, 0
      %p76 = por %p74, %p75
      %p77 = scmp.ne.s32.totalorder %s63, %s64
      %p78 = scmp.eq.s32.totalorder %s18, 1
      %p79 = por %p77, %p78
      %p81 = scmp.ne.s32.totalorder %s64, %s80
      %p82 = scmp.eq.s32.totalorder %s18, 0
      %p83 = por %p81, %p82
      %s84 = ssub.s32 %s20, %s27
      %s85 = ssub.s32 %s19, %s31
      %s86 = sor.u32 %s84, %s85
      %p87 = scmp.eq.s32.totalorder %s86, 0
      %s89 = sadd.s32 %s88, 1
      %s90 = scalar_select %p87, %s88, %s89
      %p93 = pneg %p87
      %p94 = scmp.eq.s32.totalorder %s12, 1
      %p95 = por %p93, %p94
      %p96 = scmp.ne.s32.totalorder %s88, %s91
      %p97 = scmp.eq.s32.totalorder %s12, 0
      %p98 = por %p96, %p97
      %p99 = scmp.ne.s32.totalorder %s88, %s91
      %p100 = scmp.eq.s32.totalorder %s17, 1
      %p101 = por %p99, %p100
      %p102 = scmp.ne.s32.totalorder %s91, %s92
      %p103 = scmp.eq.s32.totalorder %s17, 0
      %p104 = por %p102, %p103
      %p105 = scmp.ne.s32.totalorder %s91, %s92
      %p106 = scmp.eq.s32.totalorder %s18, 1
      %p107 = por %p105, %p106
      %p109 = scmp.ne.s32.totalorder %s92, %s108
      %p110 = scmp.eq.s32.totalorder %s18, 0
      %p111 = por %p109, %p110
      %s112 = ssub.s32 %s20, %s27
      %s113 = ssub.s32 %s19, %s31
      %s114 = sor.u32 %s112, %s113
      %p115 = scmp.eq.s32.totalorder %s114, 0
      %s117 = sadd.s32 %s116, 1
      %s118 = scalar_select %p115, %s116, %s117
      %p121 = pneg %p115
      %p122 = scmp.eq.s32.totalorder %s12, 1
      %p123 = por %p121, %p122
      %p124 = scmp.ne.s32.totalorder %s116, %s119
      %p125 = scmp.eq.s32.totalorder %s12, 0
      %p126 = por %p124, %p125
      %p127 = scmp.ne.s32.totalorder %s116, %s119
      %p128 = scmp.eq.s32.totalorder %s17, 1
      %p129 = por %p127, %p128
      %p130 = scmp.ne.s32.totalorder %s119, %s120
      %p131 = scmp.eq.s32.totalorder %s17, 0
      %p132 = por %p130, %p131
      %p133 = scmp.ne.s32.totalorder %s119, %s120
      %p134 = scmp.eq.s32.totalorder %s18, 1
      %p135 = por %p133, %p134
      %p137 = scmp.ne.s32.totalorder %s120, %s136
      %p138 = scmp.eq.s32.totalorder %s18, 0
      %p139 = por %p137, %p138
      %s140 = ssub.s32 %s20, %s27
      %s141 = ssub.s32 %s19, %s31
      %s142 = sor.u32 %s140, %s141
      %p143 = scmp.eq.s32.totalorder %s142, 0
      %s145 = sadd.s32 %s144, 1
      %s146 = scalar_select %p143, %s144, %s145
      %p149 = pneg %p143
      %p150 = scmp.eq.s32.totalorder %s12, 1
      %p151 = por %p149, %p150
      %p152 = scmp.ne.s32.totalorder %s144, %s147
      %p153 = scmp.eq.s32.totalorder %s12, 0
      %p154 = por %p152, %p153
      %p155 = scmp.ne.s32.totalorder %s144, %s147
      %p156 = scmp.eq.s32.totalorder %s17, 1
      %p157 = por %p155, %p156
      %p158 = scmp.ne.s32.totalorder %s147, %s148
      %p159 = scmp.eq.s32.totalorder %s17, 0
      %p160 = por %p158, %p159
      %p161 = scmp.ne.s32.totalorder %s147, %s148
      %p162 = scmp.eq.s32.totalorder %s18, 1
      %p163 = por %p161, %p162
      %p165 = scmp.ne.s32.totalorder %s148, %s164
      %p166 = scmp.eq.s32.totalorder %s18, 0
      %p167 = por %p165, %p166
      %s168 = ssub.s32 %s20, %s27
      %s169 = ssub.s32 %s19, %s31
      %s170 = sor.u32 %s168, %s169
      %p171 = scmp.eq.s32.totalorder %s170, 0
      %s173 = sadd.s32 %s172, 1
      %s174 = scalar_select %p171, %s172, %s173
      %p177 = pneg %p171
      %p178 = scmp.eq.s32.totalorder %s12, 1
      %p179 = por %p177, %p178
      %p180 = scmp.ne.s32.totalorder %s172, %s175
      %p181 = scmp.eq.s32.totalorder %s12, 0
      %p182 = por %p180, %p181
      %p183 = scmp.ne.s32.totalorder %s172, %s175
      %p184 = scmp.eq.s32.totalorder %s17, 1
      %p185 = por %p183, %p184
      %p186 = scmp.ne.s32.totalorder %s175, %s176
      %p187 = scmp.eq.s32.totalorder %s17, 0
      %p188 = por %p186, %p187
      %p189 = scmp.ne.s32.totalorder %s175, %s176
      %p190 = scmp.eq.s32.totalorder %s18, 1
      %p191 = por %p189, %p190
      %p193 = scmp.ne.s32.totalorder %s176, %s192
      %p194 = scmp.eq.s32.totalorder %s18, 0
      %p195 = por %p193, %p194
      %p196 = scmp.le.s32.totalorder 1, %s12
      %p197 = scmp.lt.s32.totalorder %s12, 3
      %p198 = pnand %p196, %p197
      %p199 = pneg %p198
      // Predicated region
      $region9: #{factorized_spectral_conv3d.1} parent=5 // pred_check
        _
      $region10: #{factorized_spectral_conv3d.1} parent=5 // pred_check_branch
        %201 = sbr.rel (%p198) target = $region12
      $region11: #{factorized_spectral_conv3d.1} parent=5 // pred_region
        %s202 = ssub.s32 %s12, 1
      $region12: #{factorized_spectral_conv3d.1} parent=5 // pred_fallthru
        _
      %p203 = scmp.lt.s32.totalorder %s12, 2
      // Predicated region
      $region13: #{factorized_spectral_conv3d.1} parent=5 // pred_check
        %p204 = pneg %p203
      $region14: #{factorized_spectral_conv3d.1} parent=5 // pred_check_branch
        %206 = sbr.rel (%p204) target = $region16
      $region15: #{factorized_spectral_conv3d.1} parent=5 // pred_region
        // Predicated region
        $region17: #{factorized_spectral_conv3d.1} parent=15 // pred_check
          %p207 = pneg %p44
        $region18: #{factorized_spectral_conv3d.1} parent=15 // pred_check_branch
          %209 = sbr.rel (%p207) target = $region20
        $region19: #{factorized_spectral_conv3d.1} parent=15 // pred_region
          %s210 = sand.u32 %s34, 1
          %s211 = sand.u32 %s34, 1
          %s212 = smul.addr %s211, 8
          %s213 = scalar_lea.vmem [#allocation2], %s212
          %s214 = smul.addr %s19, 2
          %s215 = scalar_lea.vmem %s0, %s214
          // Predicated region
          $region21: #{factorized_spectral_conv3d.1} parent=19 // pred_check
            _
          $region22: #{factorized_spectral_conv3d.1} parent=19 // pred_check_branch
            %217 = sbr.rel (0) target = $region24
          $region23: #{factorized_spectral_conv3d.1} parent=19 // pred_region
            // Predicated region
            $region25: #{factorized_spectral_conv3d.1} parent=23 // pred_check
              _
            $region26: #{factorized_spectral_conv3d.1} parent=23 // pred_check_branch
              %219 = sbr.rel target = $region28
            $region27: #{factorized_spectral_conv3d.1} parent=23 // pred_region
              // Predicated region
              $region40: #{factorized_spectral_conv3d.1} parent=27 // pred_check
                _
              $region41: #{factorized_spectral_conv3d.1} parent=27 // pred_check_branch
                %240 = sbr.rel (0) target = $region43
              $region42: #{factorized_spectral_conv3d.1} parent=27 // pred_region
                loop: start=0, step=1, limit=1
                $region44: #{factorized_spectral_conv3d.1} parent=42 // loop_pre_header
                  _
                $region45: #{factorized_spectral_conv3d.1} parent=42 // loop_header
                  %s242 = sphi 0, %s246
                  %p243 = scmp.ge.s32.totalorder %s242, 1
                  %s247 = sphi %s215, %s215
                  %s248 = sphi %s213, %s213
                $region46: #{factorized_spectral_conv3d.1} parent=42 // loop_header_branch
                  %245 = sbr.rel (%p243) target = $region50
                $region47: #{factorized_spectral_conv3d.1} parent=42 // loop_body
                  _
                $region48: #{factorized_spectral_conv3d.1} parent=42 // loop_footer
                  %s246 = sadd.s32 1, %s242
                $region49: #{factorized_spectral_conv3d.1} parent=42 // loop_footer_branch
                  %241 = sbr.rel target = $region45
                $region50: #{factorized_spectral_conv3d.1} parent=42 // loop_exit
                  _
                loop: start=0, step=1, limit=1
                $region51: #{factorized_spectral_conv3d.1} parent=42 // loop_pre_header
                  _
                $region52: #{factorized_spectral_conv3d.1} parent=42 // loop_header
                  %s251 = sphi 0, %s255
                  %p252 = scmp.ge.s32.totalorder %s251, 1
                  %s256 = sphi %s215, %s215
                  %s257 = sphi %s213, %s213
                $region53: #{factorized_spectral_conv3d.1} parent=42 // loop_header_branch
                  %254 = sbr.rel (%p252) target = $region57
                $region54: #{factorized_spectral_conv3d.1} parent=42 // loop_body
                  %v258 = vld [vmem:[%s256] sm:$0x3]
                  %259 = vst [vmem:[%s257] sm:$0x3] %v258
                  %v260 = vld [vmem:[%s256 + $0x4] sm:$0x3]
                  %261 = vst [vmem:[%s257 + $0x2] sm:$0x3] %v260
                  %v262 = vld [vmem:[%s256 + $0x8] sm:$0x3]
                  %263 = vst [vmem:[%s257 + $0x4] sm:$0x3] %v262
                  %v264 = vld [vmem:[%s256 + $0xc] sm:$0x3]
                  %265 = vst [vmem:[%s257 + $0x6] sm:$0x3] %v264
                $region55: #{factorized_spectral_conv3d.1} parent=42 // loop_footer
                  %s255 = sadd.s32 1, %s251
                $region56: #{factorized_spectral_conv3d.1} parent=42 // loop_footer_branch
                  %250 = sbr.rel target = $region52
                $region57: #{factorized_spectral_conv3d.1} parent=42 // loop_exit
                  _
              $region43: #{factorized_spectral_conv3d.1} parent=27 // pred_fallthru
                _
            $region28: #{factorized_spectral_conv3d.1} parent=23 // pred_fallthru
              _
            // Predicated region
            $region29: #{factorized_spectral_conv3d.1} parent=23 // pred_check
              _
            $region30: #{factorized_spectral_conv3d.1} parent=23 // pred_check_branch
              %221 = sbr.rel (0) target = $region32
            $region31: #{factorized_spectral_conv3d.1} parent=23 // pred_region
              loop: start=0, step=1, limit=1
              $region33: #{factorized_spectral_conv3d.1} parent=31 // loop_pre_header
                _
              $region34: #{factorized_spectral_conv3d.1} parent=31 // loop_header
                %s224 = sphi 0, %s228
                %p225 = scmp.ge.s32.totalorder %s224, 1
                %s229 = sphi %s215, %s215
                %s230 = sphi %s213, %s213
              $region35: #{factorized_spectral_conv3d.1} parent=31 // loop_header_branch
                %227 = sbr.rel (%p225) target = $region39
              $region36: #{factorized_spectral_conv3d.1} parent=31 // loop_body
                %v231 = vld [vmem:[%s229] sm:$0x3]
                %232 = vst [vmem:[%s230] sm:$0x3] %v231
                %v233 = vld [vmem:[%s229 + $0x4] sm:$0x3]
                %234 = vst [vmem:[%s230 + $0x2] sm:$0x3] %v233
                %v235 = vld [vmem:[%s229 + $0x8] sm:$0x3]
                %236 = vst [vmem:[%s230 + $0x4] sm:$0x3] %v235
                %v237 = vld [vmem:[%s229 + $0xc] sm:$0x3]
                %238 = vst [vmem:[%s230 + $0x6] sm:$0x3] %v237
              $region37: #{factorized_spectral_conv3d.1} parent=31 // loop_footer
                %s228 = sadd.s32 1, %s224
              $region38: #{factorized_spectral_conv3d.1} parent=31 // loop_footer_branch
                %223 = sbr.rel target = $region34
              $region39: #{factorized_spectral_conv3d.1} parent=31 // loop_exit
                _
            $region32: #{factorized_spectral_conv3d.1} parent=23 // pred_fallthru
              _
          $region24: #{factorized_spectral_conv3d.1} parent=19 // pred_fallthru
            _
          %266 = vnop
        $region20: #{factorized_spectral_conv3d.1} parent=15 // pred_fallthru
          _
        // Predicated region
        $region58: #{factorized_spectral_conv3d.1} parent=15 // pred_check
          %p267 = pneg %p70
        $region59: #{factorized_spectral_conv3d.1} parent=15 // pred_check_branch
          %269 = sbr.rel (%p267) target = $region61
        $region60: #{factorized_spectral_conv3d.1} parent=15 // pred_region
          %s270 = sand.u32 %s60, 1
          %s271 = sand.u32 %s60, 1
          %s272 = smul.addr %s271, 8
          %s273 = scalar_lea.vmem [#allocation3], %s272
          %s274 = smul.addr %s19, 2
          %s275 = scalar_lea.vmem %s1, %s274
          // Predicated region
          $region62: #{factorized_spectral_conv3d.1} parent=60 // pred_check
            _
          $region63: #{factorized_spectral_conv3d.1} parent=60 // pred_check_branch
            %277 = sbr.rel (0) target = $region65
          $region64: #{factorized_spectral_conv3d.1} parent=60 // pred_region
            // Predicated region
            $region66: #{factorized_spectral_conv3d.1} parent=64 // pred_check
              _
            $region67: #{factorized_spectral_conv3d.1} parent=64 // pred_check_branch
              %279 = sbr.rel target = $region69
            $region68: #{factorized_spectral_conv3d.1} parent=64 // pred_region
              // Predicated region
              $region81: #{factorized_spectral_conv3d.1} parent=68 // pred_check
                _
              $region82: #{factorized_spectral_conv3d.1} parent=68 // pred_check_branch
                %300 = sbr.rel (0) target = $region84
              $region83: #{factorized_spectral_conv3d.1} parent=68 // pred_region
                loop: start=0, step=1, limit=1
                $region85: #{factorized_spectral_conv3d.1} parent=83 // loop_pre_header
                  _
                $region86: #{factorized_spectral_conv3d.1} parent=83 // loop_header
                  %s302 = sphi 0, %s306
                  %p303 = scmp.ge.s32.totalorder %s302, 1
                  %s307 = sphi %s275, %s275
                  %s308 = sphi %s273, %s273
                $region87: #{factorized_spectral_conv3d.1} parent=83 // loop_header_branch
                  %305 = sbr.rel (%p303) target = $region91
                $region88: #{factorized_spectral_conv3d.1} parent=83 // loop_body
                  _
                $region89: #{factorized_spectral_conv3d.1} parent=83 // loop_footer
                  %s306 = sadd.s32 1, %s302
                $region90: #{factorized_spectral_conv3d.1} parent=83 // loop_footer_branch
                  %301 = sbr.rel target = $region86
                $region91: #{factorized_spectral_conv3d.1} parent=83 // loop_exit
                  _
                loop: start=0, step=1, limit=1
                $region92: #{factorized_spectral_conv3d.1} parent=83 // loop_pre_header
                  _
                $region93: #{factorized_spectral_conv3d.1} parent=83 // loop_header
                  %s311 = sphi 0, %s315
                  %p312 = scmp.ge.s32.totalorder %s311, 1
                  %s316 = sphi %s275, %s275
                  %s317 = sphi %s273, %s273
                $region94: #{factorized_spectral_conv3d.1} parent=83 // loop_header_branch
                  %314 = sbr.rel (%p312) target = $region98
                $region95: #{factorized_spectral_conv3d.1} parent=83 // loop_body
                  %v318 = vld [vmem:[%s316] sm:$0x3]
                  %319 = vst [vmem:[%s317] sm:$0x3] %v318
                  %v320 = vld [vmem:[%s316 + $0x4] sm:$0x3]
                  %321 = vst [vmem:[%s317 + $0x2] sm:$0x3] %v320
                  %v322 = vld [vmem:[%s316 + $0x8] sm:$0x3]
                  %323 = vst [vmem:[%s317 + $0x4] sm:$0x3] %v322
                  %v324 = vld [vmem:[%s316 + $0xc] sm:$0x3]
                  %325 = vst [vmem:[%s317 + $0x6] sm:$0x3] %v324
                $region96: #{factorized_spectral_conv3d.1} parent=83 // loop_footer
                  %s315 = sadd.s32 1, %s311
                $region97: #{factorized_spectral_conv3d.1} parent=83 // loop_footer_branch
                  %310 = sbr.rel target = $region93
                $region98: #{factorized_spectral_conv3d.1} parent=83 // loop_exit
                  _
              $region84: #{factorized_spectral_conv3d.1} parent=68 // pred_fallthru
                _
            $region69: #{factorized_spectral_conv3d.1} parent=64 // pred_fallthru
              _
            // Predicated region
            $region70: #{factorized_spectral_conv3d.1} parent=64 // pred_check
              _
            $region71: #{factorized_spectral_conv3d.1} parent=64 // pred_check_branch
              %281 = sbr.rel (0) target = $region73
            $region72: #{factorized_spectral_conv3d.1} parent=64 // pred_region
              loop: start=0, step=1, limit=1
              $region74: #{factorized_spectral_conv3d.1} parent=72 // loop_pre_header
                _
              $region75: #{factorized_spectral_conv3d.1} parent=72 // loop_header
                %s284 = sphi 0, %s288
                %p285 = scmp.ge.s32.totalorder %s284, 1
                %s289 = sphi %s275, %s275
                %s290 = sphi %s273, %s273
              $region76: #{factorized_spectral_conv3d.1} parent=72 // loop_header_branch
                %287 = sbr.rel (%p285) target = $region80
              $region77: #{factorized_spectral_conv3d.1} parent=72 // loop_body
                %v291 = vld [vmem:[%s289] sm:$0x3]
                %292 = vst [vmem:[%s290] sm:$0x3] %v291
                %v293 = vld [vmem:[%s289 + $0x4] sm:$0x3]
                %294 = vst [vmem:[%s290 + $0x2] sm:$0x3] %v293
                %v295 = vld [vmem:[%s289 + $0x8] sm:$0x3]
                %296 = vst [vmem:[%s290 + $0x4] sm:$0x3] %v295
                %v297 = vld [vmem:[%s289 + $0xc] sm:$0x3]
                %298 = vst [vmem:[%s290 + $0x6] sm:$0x3] %v297
              $region78: #{factorized_spectral_conv3d.1} parent=72 // loop_footer
                %s288 = sadd.s32 1, %s284
              $region79: #{factorized_spectral_conv3d.1} parent=72 // loop_footer_branch
                %283 = sbr.rel target = $region75
              $region80: #{factorized_spectral_conv3d.1} parent=72 // loop_exit
                _
            $region73: #{factorized_spectral_conv3d.1} parent=64 // pred_fallthru
              _
          $region65: #{factorized_spectral_conv3d.1} parent=60 // pred_fallthru
            _
          %326 = vnop
        $region61: #{factorized_spectral_conv3d.1} parent=15 // pred_fallthru
          _
        // Predicated region
        $region99: #{factorized_spectral_conv3d.1} parent=15 // pred_check
          %p327 = pneg %p98
        $region100: #{factorized_spectral_conv3d.1} parent=15 // pred_check_branch
          %329 = sbr.rel (%p327) target = $region102
        $region101: #{factorized_spectral_conv3d.1} parent=15 // pred_region
          %s330 = sand.u32 %s88, 1
          %s331 = sand.u32 %s88, 1
          %s332 = smul.addr %s331, 32
          %s333 = scalar_lea.vmem [#allocation4], %s332
          %s334 = smul.addr %s20, 2
          %s335 = sadd.s32 %s19, %s334
          %s336 = smul.addr %s335, 8
          %s337 = scalar_lea.vmem %s2, %s336
          // Predicated region
          $region103: #{factorized_spectral_conv3d.1} parent=101 // pred_check
            _
          $region104: #{factorized_spectral_conv3d.1} parent=101 // pred_check_branch
            %339 = sbr.rel (0) target = $region106
          $region105: #{factorized_spectral_conv3d.1} parent=101 // pred_region
            // Predicated region
            $region107: #{factorized_spectral_conv3d.1} parent=105 // pred_check
              _
            $region108: #{factorized_spectral_conv3d.1} parent=105 // pred_check_branch
              %341 = sbr.rel (0) target = $region110
            $region109: #{factorized_spectral_conv3d.1} parent=105 // pred_region
              // Predicated region
              $region122: #{factorized_spectral_conv3d.1} parent=109 // pred_check
                _
              $region123: #{factorized_spectral_conv3d.1} parent=109 // pred_check_branch
                %362 = sbr.rel (0) target = $region125
              $region124: #{factorized_spectral_conv3d.1} parent=109 // pred_region
                loop: start=0, step=1, limit=1
                $region126: #{factorized_spectral_conv3d.1} parent=124 // loop_pre_header
                  _
                $region127: #{factorized_spectral_conv3d.1} parent=124 // loop_header
                  %s364 = sphi 0, %s368
                  %p365 = scmp.ge.s32.totalorder %s364, 1
                  %s369 = sphi %s337, %s337
                  %s370 = sphi %s333, %s333
                $region128: #{factorized_spectral_conv3d.1} parent=124 // loop_header_branch
                  %367 = sbr.rel (%p365) target = $region132
                $region129: #{factorized_spectral_conv3d.1} parent=124 // loop_body
                  %v371 = vld [vmem:[%s369] sm:$0xff]
                  %372 = vst [vmem:[%s370] sm:$0xff] %v371
                  %v373 = vld [vmem:[%s369 + $0x10] sm:$0xff]
                  %374 = vst [vmem:[%s370 + $0x8] sm:$0xff] %v373
                  %v375 = vld [vmem:[%s369 + $0x20] sm:$0xff]
                  %376 = vst [vmem:[%s370 + $0x10] sm:$0xff] %v375
                  %v377 = vld [vmem:[%s369 + $0x30] sm:$0xff]
                  %378 = vst [vmem:[%s370 + $0x18] sm:$0xff] %v377
                $region130: #{factorized_spectral_conv3d.1} parent=124 // loop_footer
                  %s368 = sadd.s32 1, %s364
                $region131: #{factorized_spectral_conv3d.1} parent=124 // loop_footer_branch
                  %363 = sbr.rel target = $region127
                $region132: #{factorized_spectral_conv3d.1} parent=124 // loop_exit
                  _
              $region125: #{factorized_spectral_conv3d.1} parent=109 // pred_fallthru
                _
              // Predicated region
              $region133: #{factorized_spectral_conv3d.1} parent=109 // pred_check
                _
              $region134: #{factorized_spectral_conv3d.1} parent=109 // pred_check_branch
                %380 = sbr.rel target = $region136
              $region135: #{factorized_spectral_conv3d.1} parent=109 // pred_region
                _
              $region136: #{factorized_spectral_conv3d.1} parent=109 // pred_fallthru
                _
            $region110: #{factorized_spectral_conv3d.1} parent=105 // pred_fallthru
              _
            // Predicated region
            $region111: #{factorized_spectral_conv3d.1} parent=105 // pred_check
              _
            $region112: #{factorized_spectral_conv3d.1} parent=105 // pred_check_branch
              %343 = sbr.rel target = $region114
            $region113: #{factorized_spectral_conv3d.1} parent=105 // pred_region
              loop: start=0, step=1, limit=1
              $region115: #{factorized_spectral_conv3d.1} parent=113 // loop_pre_header
                _
              $region116: #{factorized_spectral_conv3d.1} parent=113 // loop_header
                %s346 = sphi 0, %s350
                %p347 = scmp.ge.s32.totalorder %s346, 1
                %s351 = sphi %s337, %s337
                %s352 = sphi %s333, %s333
              $region117: #{factorized_spectral_conv3d.1} parent=113 // loop_header_branch
                %349 = sbr.rel (%p347) target = $region121
              $region118: #{factorized_spectral_conv3d.1} parent=113 // loop_body
                %v353 = vld [vmem:[%s351] sm:$0xff]
                %354 = vst [vmem:[%s352] sm:$0xff] %v353
                %v355 = vld [vmem:[%s351 + $0x10] sm:$0xff]
                %356 = vst [vmem:[%s352 + $0x8] sm:$0xff] %v355
                %v357 = vld [vmem:[%s351 + $0x20] sm:$0xff]
                %358 = vst [vmem:[%s352 + $0x10] sm:$0xff] %v357
                %v359 = vld [vmem:[%s351 + $0x30] sm:$0xff]
                %360 = vst [vmem:[%s352 + $0x18] sm:$0xff] %v359
              $region119: #{factorized_spectral_conv3d.1} parent=113 // loop_footer
                %s350 = sadd.s32 1, %s346
              $region120: #{factorized_spectral_conv3d.1} parent=113 // loop_footer_branch
                %345 = sbr.rel target = $region116
              $region121: #{factorized_spectral_conv3d.1} parent=113 // loop_exit
                _
            $region114: #{factorized_spectral_conv3d.1} parent=105 // pred_fallthru
              _
          $region106: #{factorized_spectral_conv3d.1} parent=101 // pred_fallthru
            _
          %381 = vnop
        $region102: #{factorized_spectral_conv3d.1} parent=15 // pred_fallthru
          _
        // Predicated region
        $region137: #{factorized_spectral_conv3d.1} parent=15 // pred_check
          %p382 = pneg %p126
        $region138: #{factorized_spectral_conv3d.1} parent=15 // pred_check_branch
          %384 = sbr.rel (%p382) target = $region140
        $region139: #{factorized_spectral_conv3d.1} parent=15 // pred_region
          %s385 = sand.u32 %s116, 1
          %s386 = sand.u32 %s116, 1
          %s387 = smul.addr %s386, 32
          %s388 = scalar_lea.vmem [#allocation5], %s387
          %s389 = smul.addr %s20, 2
          %s390 = sadd.s32 %s19, %s389
          %s391 = smul.addr %s390, 8
          %s392 = scalar_lea.vmem %s3, %s391
          // Predicated region
          $region141: #{factorized_spectral_conv3d.1} parent=139 // pred_check
            _
          $region142: #{factorized_spectral_conv3d.1} parent=139 // pred_check_branch
            %394 = sbr.rel (0) target = $region144
          $region143: #{factorized_spectral_conv3d.1} parent=139 // pred_region
            // Predicated region
            $region145: #{factorized_spectral_conv3d.1} parent=143 // pred_check
              _
            $region146: #{factorized_spectral_conv3d.1} parent=143 // pred_check_branch
              %396 = sbr.rel (0) target = $region148
            $region147: #{factorized_spectral_conv3d.1} parent=143 // pred_region
              // Predicated region
              $region160: #{factorized_spectral_conv3d.1} parent=147 // pred_check
                _
              $region161: #{factorized_spectral_conv3d.1} parent=147 // pred_check_branch
                %417 = sbr.rel (0) target = $region163
              $region162: #{factorized_spectral_conv3d.1} parent=147 // pred_region
                loop: start=0, step=1, limit=1
                $region164: #{factorized_spectral_conv3d.1} parent=162 // loop_pre_header
                  _
                $region165: #{factorized_spectral_conv3d.1} parent=162 // loop_header
                  %s419 = sphi 0, %s423
                  %p420 = scmp.ge.s32.totalorder %s419, 1
                  %s424 = sphi %s392, %s392
                  %s425 = sphi %s388, %s388
                $region166: #{factorized_spectral_conv3d.1} parent=162 // loop_header_branch
                  %422 = sbr.rel (%p420) target = $region170
                $region167: #{factorized_spectral_conv3d.1} parent=162 // loop_body
                  %v426 = vld [vmem:[%s424] sm:$0xff]
                  %427 = vst [vmem:[%s425] sm:$0xff] %v426
                  %v428 = vld [vmem:[%s424 + $0x10] sm:$0xff]
                  %429 = vst [vmem:[%s425 + $0x8] sm:$0xff] %v428
                  %v430 = vld [vmem:[%s424 + $0x20] sm:$0xff]
                  %431 = vst [vmem:[%s425 + $0x10] sm:$0xff] %v430
                  %v432 = vld [vmem:[%s424 + $0x30] sm:$0xff]
                  %433 = vst [vmem:[%s425 + $0x18] sm:$0xff] %v432
                $region168: #{factorized_spectral_conv3d.1} parent=162 // loop_footer
                  %s423 = sadd.s32 1, %s419
                $region169: #{factorized_spectral_conv3d.1} parent=162 // loop_footer_branch
                  %418 = sbr.rel target = $region165
                $region170: #{factorized_spectral_conv3d.1} parent=162 // loop_exit
                  _
              $region163: #{factorized_spectral_conv3d.1} parent=147 // pred_fallthru
                _
              // Predicated region
              $region171: #{factorized_spectral_conv3d.1} parent=147 // pred_check
                _
              $region172: #{factorized_spectral_conv3d.1} parent=147 // pred_check_branch
                %435 = sbr.rel target = $region174
              $region173: #{factorized_spectral_conv3d.1} parent=147 // pred_region
                _
              $region174: #{factorized_spectral_conv3d.1} parent=147 // pred_fallthru
                _
            $region148: #{factorized_spectral_conv3d.1} parent=143 // pred_fallthru
              _
            // Predicated region
            $region149: #{factorized_spectral_conv3d.1} parent=143 // pred_check
              _
            $region150: #{factorized_spectral_conv3d.1} parent=143 // pred_check_branch
              %398 = sbr.rel target = $region152
            $region151: #{factorized_spectral_conv3d.1} parent=143 // pred_region
              loop: start=0, step=1, limit=1
              $region153: #{factorized_spectral_conv3d.1} parent=151 // loop_pre_header
                _
              $region154: #{factorized_spectral_conv3d.1} parent=151 // loop_header
                %s401 = sphi 0, %s405
                %p402 = scmp.ge.s32.totalorder %s401, 1
                %s406 = sphi %s392, %s392
                %s407 = sphi %s388, %s388
              $region155: #{factorized_spectral_conv3d.1} parent=151 // loop_header_branch
                %404 = sbr.rel (%p402) target = $region159
              $region156: #{factorized_spectral_conv3d.1} parent=151 // loop_body
                %v408 = vld [vmem:[%s406] sm:$0xff]
                %409 = vst [vmem:[%s407] sm:$0xff] %v408
                %v410 = vld [vmem:[%s406 + $0x10] sm:$0xff]
                %411 = vst [vmem:[%s407 + $0x8] sm:$0xff] %v410
                %v412 = vld [vmem:[%s406 + $0x20] sm:$0xff]
                %413 = vst [vmem:[%s407 + $0x10] sm:$0xff] %v412
                %v414 = vld [vmem:[%s406 + $0x30] sm:$0xff]
                %415 = vst [vmem:[%s407 + $0x18] sm:$0xff] %v414
              $region157: #{factorized_spectral_conv3d.1} parent=151 // loop_footer
                %s405 = sadd.s32 1, %s401
              $region158: #{factorized_spectral_conv3d.1} parent=151 // loop_footer_branch
                %400 = sbr.rel target = $region154
              $region159: #{factorized_spectral_conv3d.1} parent=151 // loop_exit
                _
            $region152: #{factorized_spectral_conv3d.1} parent=143 // pred_fallthru
              _
          $region144: #{factorized_spectral_conv3d.1} parent=139 // pred_fallthru
            _
          %436 = vnop
        $region140: #{factorized_spectral_conv3d.1} parent=15 // pred_fallthru
          _
      $region16: #{factorized_spectral_conv3d.1} parent=5 // pred_fallthru
        _
      %p437 = scmp.le.s32.totalorder 1, %s12
      %p438 = scmp.lt.s32.totalorder %s12, 3
      %p439 = pnand %p437, %p438
      %p440 = pneg %p439
      // Predicated region
      $region175: #{factorized_spectral_conv3d.1} parent=5 // pred_check
        _
      $region176: #{factorized_spectral_conv3d.1} parent=5 // pred_check_branch
        %442 = sbr.rel (%p439) target = $region178
      $region177: #{factorized_spectral_conv3d.1} parent=5 // pred_region
        %s443 = ssub.s32 %s12, 1
        %s444 = sand.u32 %s37, 1
        %s445 = sand.u32 %s37, 1
        %s446 = smul.addr %s445, 8
        %s447 = scalar_lea.vmem [#allocation2], %s446
        // Predicated region
        $region179: #{factorized_spectral_conv3d.1} parent=177 // pred_check
          %p448 = pneg %p50
        $region180: #{factorized_spectral_conv3d.1} parent=177 // pred_check_branch
          %450 = sbr.rel (%p448) target = $region182
        $region181: #{factorized_spectral_conv3d.1} parent=177 // pred_region
          _
        $region182: #{factorized_spectral_conv3d.1} parent=177 // pred_fallthru
          _
        %s451 = sand.u32 %s63, 1
        %s452 = sand.u32 %s63, 1
        %s453 = smul.addr %s452, 8
        %s454 = scalar_lea.vmem [#allocation3], %s453
        // Predicated region
        $region183: #{factorized_spectral_conv3d.1} parent=177 // pred_check
          %p455 = pneg %p76
        $region184: #{factorized_spectral_conv3d.1} parent=177 // pred_check_branch
          %457 = sbr.rel (%p455) target = $region186
        $region185: #{factorized_spectral_conv3d.1} parent=177 // pred_region
          _
        $region186: #{factorized_spectral_conv3d.1} parent=177 // pred_fallthru
          _
        %s458 = sand.u32 %s91, 1
        %s459 = sand.u32 %s91, 1
        %s460 = smul.addr %s459, 32
        %s461 = scalar_lea.vmem [#allocation4], %s460
        // Predicated region
        $region187: #{factorized_spectral_conv3d.1} parent=177 // pred_check
          %p462 = pneg %p104
        $region188: #{factorized_spectral_conv3d.1} parent=177 // pred_check_branch
          %464 = sbr.rel (%p462) target = $region190
        $region189: #{factorized_spectral_conv3d.1} parent=177 // pred_region
          _
        $region190: #{factorized_spectral_conv3d.1} parent=177 // pred_fallthru
          _
        %s465 = sand.u32 %s119, 1
        %s466 = sand.u32 %s119, 1
        %s467 = smul.addr %s466, 32
        %s468 = scalar_lea.vmem [#allocation5], %s467
        // Predicated region
        $region191: #{factorized_spectral_conv3d.1} parent=177 // pred_check
          %p469 = pneg %p132
        $region192: #{factorized_spectral_conv3d.1} parent=177 // pred_check_branch
          %471 = sbr.rel (%p469) target = $region194
        $region193: #{factorized_spectral_conv3d.1} parent=177 // pred_region
          _
        $region194: #{factorized_spectral_conv3d.1} parent=177 // pred_fallthru
          _
        %s472 = sand.u32 %s37, 1
        %s473 = sand.u32 %s37, 1
        %s474 = smul.addr %s473, 8
        %s475 = scalar_lea.vmem [#allocation2], %s474
        %p476 = pneg %p50
        %p477 = pneg %p47
        %s478 = sand.u32 %s63, 1
        %s479 = sand.u32 %s63, 1
        %s480 = smul.addr %s479, 8
        %s481 = scalar_lea.vmem [#allocation3], %s480
        %p482 = pneg %p76
        %p483 = pneg %p73
        %s484 = sand.u32 %s91, 1
        %s485 = sand.u32 %s91, 1
        %s486 = smul.addr %s485, 32
        %s487 = scalar_lea.vmem [#allocation4], %s486
        %p488 = pneg %p104
        %p489 = pneg %p101
        %s490 = sand.u32 %s119, 1
        %s491 = sand.u32 %s119, 1
        %s492 = smul.addr %s491, 32
        %s493 = scalar_lea.vmem [#allocation5], %s492
        %p494 = pneg %p132
        %p495 = pneg %p129
        %p496 = pneg %p160
        %p497 = pneg %p157
        %s498 = sand.u32 %s147, 1
        %s499 = sand.u32 %s147, 1
        %s500 = smul.addr %s499, 16
        %s501 = scalar_lea.vmem [#allocation6], %s500
        %p502 = pneg %p188
        %p503 = pneg %p185
        %s504 = sand.u32 %s175, 1
        %s505 = sand.u32 %s175, 1
        %s506 = smul.addr %s505, 16
        %s507 = scalar_lea.vmem [#allocation7], %s506
        %v508 = vld [vmem:[%s447] sm:$0x3]
        %v511 = vunpack.c.l.s4 1966171168
        %v512 = vunpack.c.0.s8 %v511
        %v513 = vlaneseq
        %v514 = vshrl.u32 %v513, 7
        %v515 = vsub.s32 %v512, %v514
        %v516 = vrot.slane %v508, %v515
        %v517 = vcombine.high %v516, %v516
        %v519 = vunpack.c.l.s4 1966171168
        %v520 = vunpack.c.0.s8 %v519
        %v521 = vlaneseq
        %v522 = vshrl.u32 %v521, 7
        %v523 = vsub.s32 %v520, %v522
        %v524 = vrot.slane %v516, %v523
        %v526 = vunpack.c.l.s4 1966171168
        %v527 = vunpack.c.0.s8 %v526
        %v528 = vlaneseq
        %v529 = vshrl.u32 %v528, 7
        %v530 = vsub.s32 %v527, %v529
        %v531 = vrot.slane %v517, %v530
        %v534 = vld [vmem:[%s454] sm:$0x3]
        %v537 = vunpack.c.l.s4 1966171168
        %v538 = vunpack.c.0.s8 %v537
        %v539 = vlaneseq
        %v540 = vshrl.u32 %v539, 7
        %v541 = vsub.s32 %v538, %v540
        %v542 = vrot.slane %v534, %v541
        %v543 = vcombine.high %v542, %v542
        %v545 = vunpack.c.l.s4 1966171168
        %v546 = vunpack.c.0.s8 %v545
        %v547 = vlaneseq
        %v548 = vshrl.u32 %v547, 7
        %v549 = vsub.s32 %v546, %v548
        %v550 = vrot.slane %v542, %v549
        %v552 = vunpack.c.l.s4 1966171168
        %v553 = vunpack.c.0.s8 %v552
        %v554 = vlaneseq
        %v555 = vshrl.u32 %v554, 7
        %v556 = vsub.s32 %v553, %v555
        %v557 = vrot.slane %v543, %v556
        %v560 = vld [vmem:[%s461] sm:$0xff]
        %v561 = vld [vmem:[%s468] sm:$0xff]
        %v562 = vadd.f32 %v524, %v550
        %v563 = vadd.f32 %v531, %v557
        %v566 = vlaneseq
        %v567 = vshrl.u32 %v566, 7
        %v568 = vsub.s32 0, %v567
        %v569 = vrot.slane %v562, %v568
        %v570 = vlaneseq
        %v571 = vshrl.u32 %v570, 7
        %v572 = vsub.s32 0, %v571
        %v573 = vrot.slane %v563, %v572
        %v576 = vmul.f32 %v560, %v569
        %v577 = vmul.f32 %v560, %v573
        %v578 = vsub.f32 %v561, %v560
        %v579 = vlaneseq
        %v580 = vshrl.u32 %v579, 7
        %v581 = vsub.s32 0, %v580
        %v582 = vrot.slane %v524, %v581
        %v583 = vlaneseq
        %v584 = vshrl.u32 %v583, 7
        %v585 = vsub.s32 0, %v584
        %v586 = vrot.slane %v531, %v585
        %v589 = vmul.f32 %v582, %v578
        %v590 = vmul.f32 %v586, %v578
        %v591 = vadd.f32 %v560, %v561
        %v592 = vlaneseq
        %v593 = vshrl.u32 %v592, 7
        %v594 = vsub.s32 0, %v593
        %v595 = vrot.slane %v550, %v594
        %v596 = vlaneseq
        %v597 = vshrl.u32 %v596, 7
        %v598 = vsub.s32 0, %v597
        %v599 = vrot.slane %v557, %v598
        %v602 = vmul.f32 %v595, %v591
        %v603 = vmul.f32 %v599, %v591
        %v604 = vsub.f32 %v576, %v602
        %v605 = vsub.f32 %v577, %v603
        %v606 = vadd.f32 %v576, %v589
        %v607 = vadd.f32 %v577, %v590
        %v608 = vadd.f32 %v604, 0.0
        %v609 = vadd.f32 %v605, 0.0
        %v610 = vadd.f32 %v606, 0.0
        %v611 = vadd.f32 %v607, 0.0
        %s612 = scalar_lea.vmem %s447, 2 [#allocation2]
        %v613 = vld [vmem:[%s612] sm:$0x3]
        %v616 = vunpack.c.l.s4 1966171168
        %v617 = vunpack.c.0.s8 %v616
        %v618 = vlaneseq
        %v619 = vshrl.u32 %v618, 7
        %v620 = vsub.s32 %v617, %v619
        %v621 = vrot.slane %v613, %v620
        %v622 = vcombine.high %v621, %v621
        %v624 = vunpack.c.l.s4 1966171168
        %v625 = vunpack.c.0.s8 %v624
        %v626 = vlaneseq
        %v627 = vshrl.u32 %v626, 7
        %v628 = vsub.s32 %v625, %v627
        %v629 = vrot.slane %v621, %v628
        %v631 = vunpack.c.l.s4 1966171168
        %v632 = vunpack.c.0.s8 %v631
        %v633 = vlaneseq
        %v634 = vshrl.u32 %v633, 7
        %v635 = vsub.s32 %v632, %v634
        %v636 = vrot.slane %v622, %v635
        %s639 = scalar_lea.vmem %s454, 2 [#allocation3]
        %v640 = vld [vmem:[%s639] sm:$0x3]
        %v643 = vunpack.c.l.s4 1966171168
        %v644 = vunpack.c.0.s8 %v643
        %v645 = vlaneseq
        %v646 = vshrl.u32 %v645, 7
        %v647 = vsub.s32 %v644, %v646
        %v648 = vrot.slane %v640, %v647
        %v649 = vcombine.high %v648, %v648
        %v651 = vunpack.c.l.s4 1966171168
        %v652 = vunpack.c.0.s8 %v651
        %v653 = vlaneseq
        %v654 = vshrl.u32 %v653, 7
        %v655 = vsub.s32 %v652, %v654
        %v656 = vrot.slane %v648, %v655
        %v658 = vunpack.c.l.s4 1966171168
        %v659 = vunpack.c.0.s8 %v658
        %v660 = vlaneseq
        %v661 = vshrl.u32 %v660, 7
        %v662 = vsub.s32 %v659, %v661
        %v663 = vrot.slane %v649, %v662
        %s666 = scalar_lea.vmem %s461, 8 [#allocation4]
        %v667 = vld [vmem:[%s666] sm:$0xff]
        %s668 = scalar_lea.vmem %s468, 8 [#allocation5]
        %v669 = vld [vmem:[%s668] sm:$0xff]
        %v670 = vadd.f32 %v629, %v656
        %v671 = vadd.f32 %v636, %v663
        %v674 = vlaneseq
        %v675 = vshrl.u32 %v674, 7
        %v676 = vsub.s32 0, %v675
        %v677 = vrot.slane %v670, %v676
        %v678 = vlaneseq
        %v679 = vshrl.u32 %v678, 7
        %v680 = vsub.s32 0, %v679
        %v681 = vrot.slane %v671, %v680
        %v684 = vmul.f32 %v667, %v677
        %v685 = vmul.f32 %v667, %v681
        %v686 = vsub.f32 %v669, %v667
        %v687 = vlaneseq
        %v688 = vshrl.u32 %v687, 7
        %v689 = vsub.s32 0, %v688
        %v690 = vrot.slane %v629, %v689
        %v691 = vlaneseq
        %v692 = vshrl.u32 %v691, 7
        %v693 = vsub.s32 0, %v692
        %v694 = vrot.slane %v636, %v693
        %v697 = vmul.f32 %v690, %v686
        %v698 = vmul.f32 %v694, %v686
        %v699 = vadd.f32 %v667, %v669
        %v700 = vlaneseq
        %v701 = vshrl.u32 %v700, 7
        %v702 = vsub.s32 0, %v701
        %v703 = vrot.slane %v656, %v702
        %v704 = vlaneseq
        %v705 = vshrl.u32 %v704, 7
        %v706 = vsub.s32 0, %v705
        %v707 = vrot.slane %v663, %v706
        %v710 = vmul.f32 %v703, %v699
        %v711 = vmul.f32 %v707, %v699
        %v712 = vsub.f32 %v684, %v710
        %v713 = vsub.f32 %v685, %v711
        %v714 = vadd.f32 %v684, %v697
        %v715 = vadd.f32 %v685, %v698
        %v716 = vadd.f32 %v608, %v712
        %v717 = vadd.f32 %v609, %v713
        %v718 = vadd.f32 %v610, %v714
        %v719 = vadd.f32 %v611, %v715
        %s720 = scalar_lea.vmem %s447, 4 [#allocation2]
        %v721 = vld [vmem:[%s720] sm:$0x3]
        %v724 = vunpack.c.l.s4 1966171168
        %v725 = vunpack.c.0.s8 %v724
        %v726 = vlaneseq
        %v727 = vshrl.u32 %v726, 7
        %v728 = vsub.s32 %v725, %v727
        %v729 = vrot.slane %v721, %v728
        %v730 = vcombine.high %v729, %v729
        %v732 = vunpack.c.l.s4 1966171168
        %v733 = vunpack.c.0.s8 %v732
        %v734 = vlaneseq
        %v735 = vshrl.u32 %v734, 7
        %v736 = vsub.s32 %v733, %v735
        %v737 = vrot.slane %v729, %v736
        %v739 = vunpack.c.l.s4 1966171168
        %v740 = vunpack.c.0.s8 %v739
        %v741 = vlaneseq
        %v742 = vshrl.u32 %v741, 7
        %v743 = vsub.s32 %v740, %v742
        %v744 = vrot.slane %v730, %v743
        %s747 = scalar_lea.vmem %s454, 4 [#allocation3]
        %v748 = vld [vmem:[%s747] sm:$0x3]
        %v751 = vunpack.c.l.s4 1966171168
        %v752 = vunpack.c.0.s8 %v751
        %v753 = vlaneseq
        %v754 = vshrl.u32 %v753, 7
        %v755 = vsub.s32 %v752, %v754
        %v756 = vrot.slane %v748, %v755
        %v757 = vcombine.high %v756, %v756
        %v759 = vunpack.c.l.s4 1966171168
        %v760 = vunpack.c.0.s8 %v759
        %v761 = vlaneseq
        %v762 = vshrl.u32 %v761, 7
        %v763 = vsub.s32 %v760, %v762
        %v764 = vrot.slane %v756, %v763
        %v766 = vunpack.c.l.s4 1966171168
        %v767 = vunpack.c.0.s8 %v766
        %v768 = vlaneseq
        %v769 = vshrl.u32 %v768, 7
        %v770 = vsub.s32 %v767, %v769
        %v771 = vrot.slane %v757, %v770
        %s774 = scalar_lea.vmem %s461, 16 [#allocation4]
        %v775 = vld [vmem:[%s774] sm:$0xff]
        %s776 = scalar_lea.vmem %s468, 16 [#allocation5]
        %v777 = vld [vmem:[%s776] sm:$0xff]
        %v778 = vadd.f32 %v737, %v764
        %v779 = vadd.f32 %v744, %v771
        %v782 = vlaneseq
        %v783 = vshrl.u32 %v782, 7
        %v784 = vsub.s32 0, %v783
        %v785 = vrot.slane %v778, %v784
        %v786 = vlaneseq
        %v787 = vshrl.u32 %v786, 7
        %v788 = vsub.s32 0, %v787
        %v789 = vrot.slane %v779, %v788
        %v792 = vmul.f32 %v775, %v785
        %v793 = vmul.f32 %v775, %v789
        %v794 = vsub.f32 %v777, %v775
        %v795 = vlaneseq
        %v796 = vshrl.u32 %v795, 7
        %v797 = vsub.s32 0, %v796
        %v798 = vrot.slane %v737, %v797
        %v799 = vlaneseq
        %v800 = vshrl.u32 %v799, 7
        %v801 = vsub.s32 0, %v800
        %v802 = vrot.slane %v744, %v801
        %v805 = vmul.f32 %v798, %v794
        %v806 = vmul.f32 %v802, %v794
        %v807 = vadd.f32 %v775, %v777
        %v808 = vlaneseq
        %v809 = vshrl.u32 %v808, 7
        %v810 = vsub.s32 0, %v809
        %v811 = vrot.slane %v764, %v810
        %v812 = vlaneseq
        %v813 = vshrl.u32 %v812, 7
        %v814 = vsub.s32 0, %v813
        %v815 = vrot.slane %v771, %v814
        %v818 = vmul.f32 %v811, %v807
        %v819 = vmul.f32 %v815, %v807
        %v820 = vsub.f32 %v792, %v818
        %v821 = vsub.f32 %v793, %v819
        %v822 = vadd.f32 %v792, %v805
        %v823 = vadd.f32 %v793, %v806
        %v824 = vadd.f32 %v716, %v820
        %v825 = vadd.f32 %v717, %v821
        %v826 = vadd.f32 %v718, %v822
        %v827 = vadd.f32 %v719, %v823
        %s828 = scalar_lea.vmem %s447, 6 [#allocation2]
        %v829 = vld [vmem:[%s828] sm:$0x3]
        %v832 = vunpack.c.l.s4 1966171168
        %v833 = vunpack.c.0.s8 %v832
        %v834 = vlaneseq
        %v835 = vshrl.u32 %v834, 7
        %v836 = vsub.s32 %v833, %v835
        %v837 = vrot.slane %v829, %v836
        %v838 = vcombine.high %v837, %v837
        %v840 = vunpack.c.l.s4 1966171168
        %v841 = vunpack.c.0.s8 %v840
        %v842 = vlaneseq
        %v843 = vshrl.u32 %v842, 7
        %v844 = vsub.s32 %v841, %v843
        %v845 = vrot.slane %v837, %v844
        %v847 = vunpack.c.l.s4 1966171168
        %v848 = vunpack.c.0.s8 %v847
        %v849 = vlaneseq
        %v850 = vshrl.u32 %v849, 7
        %v851 = vsub.s32 %v848, %v850
        %v852 = vrot.slane %v838, %v851
        %s855 = scalar_lea.vmem %s454, 6 [#allocation3]
        %v856 = vld [vmem:[%s855] sm:$0x3]
        %v859 = vunpack.c.l.s4 1966171168
        %v860 = vunpack.c.0.s8 %v859
        %v861 = vlaneseq
        %v862 = vshrl.u32 %v861, 7
        %v863 = vsub.s32 %v860, %v862
        %v864 = vrot.slane %v856, %v863
        %v865 = vcombine.high %v864, %v864
        %v867 = vunpack.c.l.s4 1966171168
        %v868 = vunpack.c.0.s8 %v867
        %v869 = vlaneseq
        %v870 = vshrl.u32 %v869, 7
        %v871 = vsub.s32 %v868, %v870
        %v872 = vrot.slane %v864, %v871
        %v874 = vunpack.c.l.s4 1966171168
        %v875 = vunpack.c.0.s8 %v874
        %v876 = vlaneseq
        %v877 = vshrl.u32 %v876, 7
        %v878 = vsub.s32 %v875, %v877
        %v879 = vrot.slane %v865, %v878
        %s882 = scalar_lea.vmem %s461, 24 [#allocation4]
        %v883 = vld [vmem:[%s882] sm:$0xff]
        %s884 = scalar_lea.vmem %s468, 24 [#allocation5]
        %v885 = vld [vmem:[%s884] sm:$0xff]
        %v886 = vadd.f32 %v845, %v872
        %v887 = vadd.f32 %v852, %v879
        %v890 = vlaneseq
        %v891 = vshrl.u32 %v890, 7
        %v892 = vsub.s32 0, %v891
        %v893 = vrot.slane %v886, %v892
        %v894 = vlaneseq
        %v895 = vshrl.u32 %v894, 7
        %v896 = vsub.s32 0, %v895
        %v897 = vrot.slane %v887, %v896
        %v900 = vmul.f32 %v883, %v893
        %v901 = vmul.f32 %v883, %v897
        %v902 = vsub.f32 %v885, %v883
        %v903 = vlaneseq
        %v904 = vshrl.u32 %v903, 7
        %v905 = vsub.s32 0, %v904
        %v906 = vrot.slane %v845, %v905
        %v907 = vlaneseq
        %v908 = vshrl.u32 %v907, 7
        %v909 = vsub.s32 0, %v908
        %v910 = vrot.slane %v852, %v909
        %v913 = vmul.f32 %v906, %v902
        %v914 = vmul.f32 %v910, %v902
        %v915 = vadd.f32 %v883, %v885
        %v916 = vlaneseq
        %v917 = vshrl.u32 %v916, 7
        %v918 = vsub.s32 0, %v917
        %v919 = vrot.slane %v872, %v918
        %v920 = vlaneseq
        %v921 = vshrl.u32 %v920, 7
        %v922 = vsub.s32 0, %v921
        %v923 = vrot.slane %v879, %v922
        %v926 = vmul.f32 %v919, %v915
        %v927 = vmul.f32 %v923, %v915
        %v928 = vsub.f32 %v900, %v926
        %v929 = vsub.f32 %v901, %v927
        %v930 = vadd.f32 %v900, %v913
        %v931 = vadd.f32 %v901, %v914
        %v932 = vadd.f32 %v824, %v928
        %v933 = vadd.f32 %v825, %v929
        %v934 = vadd.f32 %v826, %v930
        %v935 = vadd.f32 %v827, %v931
        %936 = vst [vmem:[%s501] sm:$0xff] %v932
        %937 = vst [vmem:[%s501 + $0x8] sm:$0xff] %v933
        %938 = vst [vmem:[%s507] sm:$0xff] %v934
        %939 = vst [vmem:[%s507 + $0x8] sm:$0xff] %v935
        %s940 = sand.u32 %s147, 1
        %s941 = sand.u32 %s147, 1
        %s942 = smul.addr %s941, 16
        %s943 = scalar_lea.vmem [#allocation6], %s942
        %s944 = sand.u32 %s175, 1
        %s945 = sand.u32 %s175, 1
        %s946 = smul.addr %s945, 16
        %s947 = scalar_lea.vmem [#allocation7], %s946
        // Predicated region
        $region195: #{factorized_spectral_conv3d.1} parent=177 // pred_check
          %p948 = pneg %p157
        $region196: #{factorized_spectral_conv3d.1} parent=177 // pred_check_branch
          %950 = sbr.rel (%p948) target = $region198
        $region197: #{factorized_spectral_conv3d.1} parent=177 // pred_region
          %s951 = smul.addr %s22, 2
          %s952 = sadd.s32 %s21, %s951
          %s953 = smul.addr %s952, 8
          %s954 = scalar_lea.vmem %s4, %s953
          // Predicated region
          $region199: #{factorized_spectral_conv3d.1} parent=197 // pred_check
            _
          $region200: #{factorized_spectral_conv3d.1} parent=197 // pred_check_branch
            %956 = sbr.rel (0) target = $region202
          $region201: #{factorized_spectral_conv3d.1} parent=197 // pred_region
            // Predicated region
            $region203: #{factorized_spectral_conv3d.1} parent=201 // pred_check
              _
            $region204: #{factorized_spectral_conv3d.1} parent=201 // pred_check_branch
              %958 = sbr.rel (0) target = $region206
            $region205: #{factorized_spectral_conv3d.1} parent=201 // pred_region
              // Predicated region
              $region218: #{factorized_spectral_conv3d.1} parent=205 // pred_check
                _
              $region219: #{factorized_spectral_conv3d.1} parent=205 // pred_check_branch
                %975 = sbr.rel (0) target = $region221
              $region220: #{factorized_spectral_conv3d.1} parent=205 // pred_region
                loop: start=0, step=1, limit=1
                $region222: #{factorized_spectral_conv3d.1} parent=220 // loop_pre_header
                  _
                $region223: #{factorized_spectral_conv3d.1} parent=220 // loop_header
                  %s977 = sphi 0, %s981
                  %p978 = scmp.ge.s32.totalorder %s977, 1
                  %s982 = sphi %s943, %s943
                  %s983 = sphi %s954, %s954
                $region224: #{factorized_spectral_conv3d.1} parent=220 // loop_header_branch
                  %980 = sbr.rel (%p978) target = $region228
                $region225: #{factorized_spectral_conv3d.1} parent=220 // loop_body
                  %v984 = vld [vmem:[%s982] sm:$0xff]
                  %985 = vst [vmem:[%s983] sm:$0xff] %v984
                  %v986 = vld [vmem:[%s982 + $0x8] sm:$0xff]
                  %987 = vst [vmem:[%s983 + $0x10] sm:$0xff] %v986
                $region226: #{factorized_spectral_conv3d.1} parent=220 // loop_footer
                  %s981 = sadd.s32 1, %s977
                $region227: #{factorized_spectral_conv3d.1} parent=220 // loop_footer_branch
                  %976 = sbr.rel target = $region223
                $region228: #{factorized_spectral_conv3d.1} parent=220 // loop_exit
                  _
              $region221: #{factorized_spectral_conv3d.1} parent=205 // pred_fallthru
                _
              // Predicated region
              $region229: #{factorized_spectral_conv3d.1} parent=205 // pred_check
                _
              $region230: #{factorized_spectral_conv3d.1} parent=205 // pred_check_branch
                %989 = sbr.rel target = $region232
              $region231: #{factorized_spectral_conv3d.1} parent=205 // pred_region
                _
              $region232: #{factorized_spectral_conv3d.1} parent=205 // pred_fallthru
                _
            $region206: #{factorized_spectral_conv3d.1} parent=201 // pred_fallthru
              _
            // Predicated region
            $region207: #{factorized_spectral_conv3d.1} parent=201 // pred_check
              _
            $region208: #{factorized_spectral_conv3d.1} parent=201 // pred_check_branch
              %960 = sbr.rel target = $region210
            $region209: #{factorized_spectral_conv3d.1} parent=201 // pred_region
              loop: start=0, step=1, limit=1
              $region211: #{factorized_spectral_conv3d.1} parent=209 // loop_pre_header
                _
              $region212: #{factorized_spectral_conv3d.1} parent=209 // loop_header
                %s963 = sphi 0, %s967
                %p964 = scmp.ge.s32.totalorder %s963, 1
                %s968 = sphi %s943, %s943
                %s969 = sphi %s954, %s954
              $region213: #{factorized_spectral_conv3d.1} parent=209 // loop_header_branch
                %966 = sbr.rel (%p964) target = $region217
              $region214: #{factorized_spectral_conv3d.1} parent=209 // loop_body
                %v970 = vld [vmem:[%s968] sm:$0xff]
                %971 = vst [vmem:[%s969] sm:$0xff] %v970
                %v972 = vld [vmem:[%s968 + $0x8] sm:$0xff]
                %973 = vst [vmem:[%s969 + $0x10] sm:$0xff] %v972
              $region215: #{factorized_spectral_conv3d.1} parent=209 // loop_footer
                %s967 = sadd.s32 1, %s963
              $region216: #{factorized_spectral_conv3d.1} parent=209 // loop_footer_branch
                %962 = sbr.rel target = $region212
              $region217: #{factorized_spectral_conv3d.1} parent=209 // loop_exit
                _
            $region210: #{factorized_spectral_conv3d.1} parent=201 // pred_fallthru
              _
          $region202: #{factorized_spectral_conv3d.1} parent=197 // pred_fallthru
            _
          %990 = vnop
        $region198: #{factorized_spectral_conv3d.1} parent=177 // pred_fallthru
          _
        // Predicated region
        $region233: #{factorized_spectral_conv3d.1} parent=177 // pred_check
          %p991 = pneg %p185
        $region234: #{factorized_spectral_conv3d.1} parent=177 // pred_check_branch
          %993 = sbr.rel (%p991) target = $region236
        $region235: #{factorized_spectral_conv3d.1} parent=177 // pred_region
          %s994 = smul.addr %s22, 2
          %s995 = sadd.s32 %s21, %s994
          %s996 = smul.addr %s995, 8
          %s997 = scalar_lea.vmem %s5, %s996
          // Predicated region
          $region237: #{factorized_spectral_conv3d.1} parent=235 // pred_check
            _
          $region238: #{factorized_spectral_conv3d.1} parent=235 // pred_check_branch
            %999 = sbr.rel (0) target = $region240
          $region239: #{factorized_spectral_conv3d.1} parent=235 // pred_region
            // Predicated region
            $region241: #{factorized_spectral_conv3d.1} parent=239 // pred_check
              _
            $region242: #{factorized_spectral_conv3d.1} parent=239 // pred_check_branch
              %1001 = sbr.rel (0) target = $region244
            $region243: #{factorized_spectral_conv3d.1} parent=239 // pred_region
              // Predicated region
              $region256: #{factorized_spectral_conv3d.1} parent=243 // pred_check
                _
              $region257: #{factorized_spectral_conv3d.1} parent=243 // pred_check_branch
                %1018 = sbr.rel (0) target = $region259
              $region258: #{factorized_spectral_conv3d.1} parent=243 // pred_region
                loop: start=0, step=1, limit=1
                $region260: #{factorized_spectral_conv3d.1} parent=258 // loop_pre_header
                  _
                $region261: #{factorized_spectral_conv3d.1} parent=258 // loop_header
                  %s1020 = sphi 0, %s1024
                  %p1021 = scmp.ge.s32.totalorder %s1020, 1
                  %s1025 = sphi %s947, %s947
                  %s1026 = sphi %s997, %s997
                $region262: #{factorized_spectral_conv3d.1} parent=258 // loop_header_branch
                  %1023 = sbr.rel (%p1021) target = $region266
                $region263: #{factorized_spectral_conv3d.1} parent=258 // loop_body
                  %v1027 = vld [vmem:[%s1025] sm:$0xff]
                  %1028 = vst [vmem:[%s1026] sm:$0xff] %v1027
                  %v1029 = vld [vmem:[%s1025 + $0x8] sm:$0xff]
                  %1030 = vst [vmem:[%s1026 + $0x10] sm:$0xff] %v1029
                $region264: #{factorized_spectral_conv3d.1} parent=258 // loop_footer
                  %s1024 = sadd.s32 1, %s1020
                $region265: #{factorized_spectral_conv3d.1} parent=258 // loop_footer_branch
                  %1019 = sbr.rel target = $region261
                $region266: #{factorized_spectral_conv3d.1} parent=258 // loop_exit
                  _
              $region259: #{factorized_spectral_conv3d.1} parent=243 // pred_fallthru
                _
              // Predicated region
              $region267: #{factorized_spectral_conv3d.1} parent=243 // pred_check
                _
              $region268: #{factorized_spectral_conv3d.1} parent=243 // pred_check_branch
                %1032 = sbr.rel target = $region270
              $region269: #{factorized_spectral_conv3d.1} parent=243 // pred_region
                _
              $region270: #{factorized_spectral_conv3d.1} parent=243 // pred_fallthru
                _
            $region244: #{factorized_spectral_conv3d.1} parent=239 // pred_fallthru
              _
            // Predicated region
            $region245: #{factorized_spectral_conv3d.1} parent=239 // pred_check
              _
            $region246: #{factorized_spectral_conv3d.1} parent=239 // pred_check_branch
              %1003 = sbr.rel target = $region248
            $region247: #{factorized_spectral_conv3d.1} parent=239 // pred_region
              loop: start=0, step=1, limit=1
              $region249: #{factorized_spectral_conv3d.1} parent=247 // loop_pre_header
                _
              $region250: #{factorized_spectral_conv3d.1} parent=247 // loop_header
                %s1006 = sphi 0, %s1010
                %p1007 = scmp.ge.s32.totalorder %s1006, 1
                %s1011 = sphi %s947, %s947
                %s1012 = sphi %s997, %s997
              $region251: #{factorized_spectral_conv3d.1} parent=247 // loop_header_branch
                %1009 = sbr.rel (%p1007) target = $region255
              $region252: #{factorized_spectral_conv3d.1} parent=247 // loop_body
                %v1013 = vld [vmem:[%s1011] sm:$0xff]
                %1014 = vst [vmem:[%s1012] sm:$0xff] %v1013
                %v1015 = vld [vmem:[%s1011 + $0x8] sm:$0xff]
                %1016 = vst [vmem:[%s1012 + $0x10] sm:$0xff] %v1015
              $region253: #{factorized_spectral_conv3d.1} parent=247 // loop_footer
                %s1010 = sadd.s32 1, %s1006
              $region254: #{factorized_spectral_conv3d.1} parent=247 // loop_footer_branch
                %1005 = sbr.rel target = $region250
              $region255: #{factorized_spectral_conv3d.1} parent=247 // loop_exit
                _
            $region248: #{factorized_spectral_conv3d.1} parent=239 // pred_fallthru
              _
          $region240: #{factorized_spectral_conv3d.1} parent=235 // pred_fallthru
            _
          %1033 = vnop
        $region236: #{factorized_spectral_conv3d.1} parent=177 // pred_fallthru
          _
      $region178: #{factorized_spectral_conv3d.1} parent=5 // pred_fallthru
        _
      %p1034 = scmp.le.s32.totalorder 2, %s12
      // Predicated region
      $region271: #{factorized_spectral_conv3d.1} parent=5 // pred_check
        %p1035 = pneg %p1034
      $region272: #{factorized_spectral_conv3d.1} parent=5 // pred_check_branch
        %1037 = sbr.rel (%p1035) target = $region274
      $region273: #{factorized_spectral_conv3d.1} parent=5 // pred_region
        %s1038 = ssub.s32 %s12, 2
        // Predicated region
        $region275: #{factorized_spectral_conv3d.1} parent=273 // pred_check
          %p1039 = pneg %p163
        $region276: #{factorized_spectral_conv3d.1} parent=273 // pred_check_branch
          %1041 = sbr.rel (%p1039) target = $region278
        $region277: #{factorized_spectral_conv3d.1} parent=273 // pred_region
          %s1042 = sand.u32 %s148, 1
          %s1043 = sand.u32 %s148, 1
          %s1044 = smul.addr %s1043, 16
          %s1045 = scalar_lea.vmem [#allocation6], %s1044
        $region278: #{factorized_spectral_conv3d.1} parent=273 // pred_fallthru
          _
        // Predicated region
        $region279: #{factorized_spectral_conv3d.1} parent=273 // pred_check
          %p1046 = pneg %p191
        $region280: #{factorized_spectral_conv3d.1} parent=273 // pred_check_branch
          %1048 = sbr.rel (%p1046) target = $region282
        $region281: #{factorized_spectral_conv3d.1} parent=273 // pred_region
          %s1049 = sand.u32 %s176, 1
          %s1050 = sand.u32 %s176, 1
          %s1051 = smul.addr %s1050, 16
          %s1052 = scalar_lea.vmem [#allocation7], %s1051
        $region282: #{factorized_spectral_conv3d.1} parent=273 // pred_fallthru
          _
      $region274: #{factorized_spectral_conv3d.1} parent=5 // pred_fallthru
        _
    $region6: #{factorized_spectral_conv3d.1} parent=1 // loop_footer
      %s16 = sadd.s32 1, %s12
    $region7: #{factorized_spectral_conv3d.1} parent=1 // loop_footer_branch
      %11 = sbr.rel target = $region3
    $region8: #{factorized_spectral_conv3d.1} parent=1 // loop_exit
      _

// kernel: reverse.1
$region0: #{reverse.1}
  #allocation0 [shape = 's32[1]{0}', space=sflag, size = 0x4, scoped, tag = 'scoped memory for reverse.1']
  %s0 = inlined_call_operand.vmem [shape: f32[2,6,8,8,3], index: 0, kind: input, shape index: {}]
  %s1 = inlined_call_operand.vmem [shape: f32[2,6,8,8,3], index: 1, kind: output, shape index: {}]
  %s2 = scalar_lea.vmem %s0, 16
  %v3 = vld [vmem:[%s2] sm:$0xff]
  %4 = vst [vmem:[%s1] sm:$0xff] %v3
  %s5 = scalar_lea.vmem %s0, 160
  %v6 = vld [vmem:[%s5] sm:$0xff]
  %s7 = scalar_lea.vmem %s1, 144
  %8 = vst [vmem:[%s7] sm:$0xff] %v6
  %s9 = scalar_lea.vmem %s0, 40
  %v10 = vld [vmem:[%s9] sm:$0xff]
  %s11 = scalar_lea.vmem %s1, 24
  %12 = vst [vmem:[%s11] sm:$0xff] %v10
  %s13 = scalar_lea.vmem %s0, 184
  %v14 = vld [vmem:[%s13] sm:$0xff]
  %s15 = scalar_lea.vmem %s1, 168
  %16 = vst [vmem:[%s15] sm:$0xff] %v14
  %s17 = scalar_lea.vmem %s0, 64
  %v18 = vld [vmem:[%s17] sm:$0xff]
  %s19 = scalar_lea.vmem %s1, 48
  %20 = vst [vmem:[%s19] sm:$0xff] %v18
  %s21 = scalar_lea.vmem %s0, 208
  %v22 = vld [vmem:[%s21] sm:$0xff]
  %s23 = scalar_lea.vmem %s1, 192
  %24 = vst [vmem:[%s23] sm:$0xff] %v22
  %s25 = scalar_lea.vmem %s0, 88
  %v26 = vld [vmem:[%s25] sm:$0xff]
  %s27 = scalar_lea.vmem %s1, 72
  %28 = vst [vmem:[%s27] sm:$0xff] %v26
  %s29 = scalar_lea.vmem %s0, 232
  %v30 = vld [vmem:[%s29] sm:$0xff]
  %s31 = scalar_lea.vmem %s1, 216
  %32 = vst [vmem:[%s31] sm:$0xff] %v30
  %s33 = scalar_lea.vmem %s0, 112
  %v34 = vld [vmem:[%s33] sm:$0xff]
  %s35 = scalar_lea.vmem %s1, 96
  %36 = vst [vmem:[%s35] sm:$0xff] %v34
  %s37 = scalar_lea.vmem %s0, 256
  %v38 = vld [vmem:[%s37] sm:$0xff]
  %s39 = scalar_lea.vmem %s1, 240
  %40 = vst [vmem:[%s39] sm:$0xff] %v38
  %s41 = scalar_lea.vmem %s0, 136
  %v42 = vld [vmem:[%s41] sm:$0xff]
  %s43 = scalar_lea.vmem %s1, 120
  %44 = vst [vmem:[%s43] sm:$0xff] %v42
  %s45 = scalar_lea.vmem %s0, 280
  %v46 = vld [vmem:[%s45] sm:$0xff]
  %s47 = scalar_lea.vmem %s1, 264
  %48 = vst [vmem:[%s47] sm:$0xff] %v46
  %s49 = scalar_lea.vmem %s0, 8
  %v50 = vld [vmem:[%s49] sm:$0xff]
  %s51 = scalar_lea.vmem %s1, 8
  %52 = vst [vmem:[%s51] sm:$0xff] %v50
  %s53 = scalar_lea.vmem %s0, 152
  %v54 = vld [vmem:[%s53] sm:$0xff]
  %s55 = scalar_lea.vmem %s1, 152
  %56 = vst [vmem:[%s55] sm:$0xff] %v54
  %s57 = scalar_lea.vmem %s0, 32
  %v58 = vld [vmem:[%s57] sm:$0xff]
  %s59 = scalar_lea.vmem %s1, 32
  %60 = vst [vmem:[%s59] sm:$0xff] %v58
  %s61 = scalar_lea.vmem %s0, 176
  %v62 = vld [vmem:[%s61] sm:$0xff]
  %s63 = scalar_lea.vmem %s1, 176
  %64 = vst [vmem:[%s63] sm:$0xff] %v62
  %s65 = scalar_lea.vmem %s0, 56
  %v66 = vld [vmem:[%s65] sm:$0xff]
  %s67 = scalar_lea.vmem %s1, 56
  %68 = vst [vmem:[%s67] sm:$0xff] %v66
  %s69 = scalar_lea.vmem %s0, 200
  %v70 = vld [vmem:[%s69] sm:$0xff]
  %s71 = scalar_lea.vmem %s1, 200
  %72 = vst [vmem:[%s71] sm:$0xff] %v70
  %s73 = scalar_lea.vmem %s0, 80
  %v74 = vld [vmem:[%s73] sm:$0xff]
  %s75 = scalar_lea.vmem %s1, 80
  %76 = vst [vmem:[%s75] sm:$0xff] %v74
  %s77 = scalar_lea.vmem %s0, 224
  %v78 = vld [vmem:[%s77] sm:$0xff]
  %s79 = scalar_lea.vmem %s1, 224
  %80 = vst [vmem:[%s79] sm:$0xff] %v78
  %s81 = scalar_lea.vmem %s0, 104
  %v82 = vld [vmem:[%s81] sm:$0xff]
  %s83 = scalar_lea.vmem %s1, 104
  %84 = vst [vmem:[%s83] sm:$0xff] %v82
  %s85 = scalar_lea.vmem %s0, 248
  %v86 = vld [vmem:[%s85] sm:$0xff]
  %s87 = scalar_lea.vmem %s1, 248
  %88 = vst [vmem:[%s87] sm:$0xff] %v86
  %s89 = scalar_lea.vmem %s0, 128
  %v90 = vld [vmem:[%s89] sm:$0xff]
  %s91 = scalar_lea.vmem %s1, 128
  %92 = vst [vmem:[%s91] sm:$0xff] %v90
  %s93 = scalar_lea.vmem %s0, 272
  %v94 = vld [vmem:[%s93] sm:$0xff]
  %s95 = scalar_lea.vmem %s1, 272
  %96 = vst [vmem:[%s95] sm:$0xff] %v94
  %v97 = vld [vmem:[%s0] sm:$0xff]
  %s98 = scalar_lea.vmem %s1, 16
  %99 = vst [vmem:[%s98] sm:$0xff] %v97
  %s100 = scalar_lea.vmem %s0, 144
  %v101 = vld [vmem:[%s100] sm:$0xff]
  %s102 = scalar_lea.vmem %s1, 160
  %103 = vst [vmem:[%s102] sm:$0xff] %v101
  %s104 = scalar_lea.vmem %s0, 24
  %v105 = vld [vmem:[%s104] sm:$0xff]
  %s106 = scalar_lea.vmem %s1, 40
  %107 = vst [vmem:[%s106] sm:$0xff] %v105
  %s108 = scalar_lea.vmem %s0, 168
  %v109 = vld [vmem:[%s108] sm:$0xff]
  %s110 = scalar_lea.vmem %s1, 184
  %111 = vst [vmem:[%s110] sm:$0xff] %v109
  %s112 = scalar_lea.vmem %s0, 48
  %v113 = vld [vmem:[%s112] sm:$0xff]
  %s114 = scalar_lea.vmem %s1, 64
  %115 = vst [vmem:[%s114] sm:$0xff] %v113
  %s116 = scalar_lea.vmem %s0, 192
  %v117 = vld [vmem:[%s116] sm:$0xff]
  %s118 = scalar_lea.vmem %s1, 208
  %119 = vst [vmem:[%s118] sm:$0xff] %v117
  %s120 = scalar_lea.vmem %s0, 72
  %v121 = vld [vmem:[%s120] sm:$0xff]
  %s122 = scalar_lea.vmem %s1, 88
  %123 = vst [vmem:[%s122] sm:$0xff] %v121
  %s124 = scalar_lea.vmem %s0, 216
  %v125 = vld [vmem:[%s124] sm:$0xff]
  %s126 = scalar_lea.vmem %s1, 232
  %127 = vst [vmem:[%s126] sm:$0xff] %v125
  %s128 = scalar_lea.vmem %s0, 96
  %v129 = vld [vmem:[%s128] sm:$0xff]
  %s130 = scalar_lea.vmem %s1, 112
  %131 = vst [vmem:[%s130] sm:$0xff] %v129
  %s132 = scalar_lea.vmem %s0, 240
  %v133 = vld [vmem:[%s132] sm:$0xff]
  %s134 = scalar_lea.vmem %s1, 256
  %135 = vst [vmem:[%s134] sm:$0xff] %v133
  %s136 = scalar_lea.vmem %s0, 120
  %v137 = vld [vmem:[%s136] sm:$0xff]
  %s138 = scalar_lea.vmem %s1, 136
  %139 = vst [vmem:[%s138] sm:$0xff] %v137
  %s140 = scalar_lea.vmem %s0, 264
  %v141 = vld [vmem:[%s140] sm:$0xff]
  %s142 = scalar_lea.vmem %s1, 280
  %143 = vst [vmem:[%s142] sm:$0xff] %v141

</llo_original>
